<compile_context>
chip_gen: v7x
topology: tpu7x:2x2x1
jax: 0.10.0
libtpu: 0.0.40
codegen_flags: <defaults>
</compile_context>

<pallas_src>
from functools import partial

import jax
import jax.numpy as jnp
from jax.experimental import pallas as pl
from jax.experimental.pallas import tpu as pltpu

EPS = 1e-5


# --------------------------------------------------------------------------------------
# Weight preprocessing (wrapper side, plain XLA — parameter-sized, cheap)
# --------------------------------------------------------------------------------------
def _band_conv3x3_weights(w_hwio, W):
    """Fold the horizontal taps (dx) and the W axis of a 3x3, pad=1 conv into one banded
    matrix per vertical tap dy.  B[dy] maps one image row's (W*Cin) lanes to (W*Cout)
    output lanes; horizontal zero-padding is implicit (out-of-range taps are zero)."""
    _, _, cin, cout = w_hwio.shape
    wi = jnp.arange(W)[:, None]           # input column
    wo = jnp.arange(W)[None, :]           # output column
    dx = wi - wo + 1                      # tap index, valid in [0, 2]
    valid = ((dx >= 0) & (dx <= 2)).astype(w_hwio.dtype)
    taps = w_hwio[:, jnp.clip(dx, 0, 2)]                      # (3, W, W, cin, cout)
    taps = taps * valid[None, :, :, None, None]
    return jnp.transpose(taps, (0, 1, 3, 2, 4)).reshape(3, W * cin, W * cout)


def _blockdiag_1x1_weights(w_io, W):
    """1x1 conv as a block-diagonal (W*Cin, W*Cout) matrix in the (w, c) lane layout."""
    cin, cout = w_io.shape
    eye = jnp.eye(W, dtype=w_io.dtype)
    return jnp.einsum("ab,ij->aibj", eye, w_io).reshape(W * cin, W * cout)


# --------------------------------------------------------------------------------------
# Fused kernel
# --------------------------------------------------------------------------------------
def make_resblock_kernel(N, H, W, Cin, Cout, has_shortcut, cdtype):
    WCin, WCout = W * Cin, W * Cout
    NH = N * H
    inv_count = 1.0 / float(N * H * W)    # BN averages over N*H*W pixels per channel

    def bn_train(y, gamma, beta, S, ST):
        """Single-pass training-mode BN on y:(NH, WCout).  Per-channel stats via one batched
        sublane reduce + two small channel-selector matmuls (lane index = w*Cout + c)."""
        col_sum = jnp.sum(y, axis=0, keepdims=True)                   # (1, WCout)
        col_sq = jnp.sum(y * y, axis=0, keepdims=True)                # (1, WCout)
        ch = jnp.dot(jnp.concatenate([col_sum, col_sq], axis=0), S,
                     preferred_element_type=jnp.float32)              # (2, Cout)
        mean = ch[0:1, :] * inv_count
        var = ch[1:2, :] * inv_count - mean * mean                    # E[x^2] - E[x]^2
        scale = gamma * jax.lax.rsqrt(var + EPS)                      # (1, Cout)
        shift = beta - mean * scale                                   # (1, Cout)
        rows = jnp.dot(jnp.concatenate([scale, shift], axis=0), ST,
                       preferred_element_type=jnp.float32)            # (2, WCout)
        return y * rows[0:1, :] + rows[1:2, :]

    def conv3x3(v, w_ref, first_row, last_row):
        """3x3 'SAME' conv as ONE matmul.  v:(NH, L) f32 rows (r = n*H + h).  The dy=0/dy=2
        taps come from sublane rolls with each image's border row masked to zero (implicit
        vertical padding); horizontal padding is already baked into the banded weight."""
        up = jnp.where(first_row, 0.0, pltpu.roll(v, 1, axis=0))      # input row h-1
        dn = jnp.where(last_row, 0.0, pltpu.roll(v, NH - 1, axis=0))  # input row h+1
        lhs = jnp.concatenate([up, v, dn], axis=1).astype(cdtype)     # (NH, 3L)
        return jnp.dot(lhs, w_ref[...], preferred_element_type=jnp.float32)

    def kernel(*refs):
        if has_shortcut:
            (x_ref, w1_ref, w2_ref, g1_ref, be1_ref, g2_ref, be2_ref,
             gs_ref, bes_ref, s_ref, st_ref, o_ref) = refs
        else:
            (x_ref, w1_ref, w2_ref, g1_ref, be1_ref, g2_ref, be2_ref,
             s_ref, st_ref, o_ref) = refs

        S = s_ref[...]
        ST = st_ref[...]
        x = x_ref[...]                                                # (NH, WCin) f32

        # Per-image row index (r = n*H + h) -> masks for the vertical halo.
        h = jax.lax.broadcasted_iota(jnp.int32, (NH, 1), 0) % H
        first_row = h == 0
        last_row = h == H - 1

        # ---- conv1 (+ folded 1x1 shortcut as extra output lanes); biases cancel in BN ----
        acc1 = conv3x3(x, w1_ref, first_row, last_row)                # (NH, WCout [* 2])

        # ---- main path: BN1 -> ReLU -> conv2 -> BN2 ----
        y1 = jnp.maximum(bn_train(acc1[:, :WCout], g1_ref[...], be1_ref[...], S, ST), 0.0)
        y2 = bn_train(conv3x3(y1, w2_ref, first_row, last_row),
                      g2_ref[...], be2_ref[...], S, ST)

        # ---- shortcut branch ----
        if has_shortcut:
            sc = bn_train(acc1[:, WCout:], gs_ref[...], bes_ref[...], S, ST)
        else:
            sc = x                                                    # identity (Cin == Cout)

        o_ref[...] = jnp.maximum(y2 + sc, 0.0)                        # lane-dense (NH, 128) store

    return kernel


# --------------------------------------------------------------------------------------
# Wrapper
# --------------------------------------------------------------------------------------
@partial(jax.jit, static_argnames=("compute_dtype",))
def resblock_forward(x_nchw, params, *, compute_dtype=jnp.bfloat16):
    """ResBlock forward.  x_nchw: (N, Cin, H, W) float32.  Returns (N, Cout, H, W) float32."""
    N, Cin, H, W = x_nchw.shape
    Cout = params["w1"].shape[-1]
    has_shortcut = Cin != Cout
    WCin, WCout = W * Cin, W * Cout
    NH = N * H

    # NCHW -> (N*H, W*Cin): lane dim carries W*C (128 wide here), sublane dim carries N*H.
    x_flat = jnp.transpose(x_nchw.astype(jnp.float32), (0, 2, 3, 1)).reshape(NH, WCin)

    # Banded 3x3 weights, stacked over dy so each conv is one matmul with K = 3*W*Cin.
    B1 = _band_conv3x3_weights(params["w1"].astype(jnp.float32), W).reshape(3 * WCin, WCout)
    B2 = _band_conv3x3_weights(params["w2"].astype(jnp.float32), W).reshape(3 * WCout, WCout)
    if has_shortcut:
        # Fold the 1x1 shortcut conv into conv1's weight as extra output lanes:
        # only the center-row (dy=1) block of the K axis is non-zero for the shortcut.
        Bs = _blockdiag_1x1_weights(params["ws"].astype(jnp.float32), W)      # (WCin, WCout)
        z = jnp.zeros((WCin, WCout), jnp.float32)
        B1 = jnp.concatenate([B1, jnp.concatenate([z, Bs, z], axis=0)], axis=1)  # (3WCin, 2WCout)
    W1 = B1.astype(compute_dtype)
    W2 = B2.astype(compute_dtype)

    # Channel-selector matrices for BN reduce/broadcast in the (w, c) lane layout.
    S = jnp.tile(jnp.eye(Cout, dtype=jnp.float32), (W, 1))          # (WCout, Cout)
    ST = jnp.transpose(S)                                           # (Cout, WCout)

    def row(v):
        return v.reshape(1, -1).astype(jnp.float32)

    args = [x_flat, W1, W2,
            row(params["g1"]), row(params["be1"]),
            row(params["g2"]), row(params["be2"])]
    if has_shortcut:
        args += [row(params["gs"]), row(params["bes"])]
    args += [S, ST]

    # Advisory cost estimate for XLA's scheduler around the fused call.
    w_bytes = jnp.dtype(compute_dtype).itemsize
    out1_lanes = 2 * WCout if has_shortcut else WCout
    flops = 2 * NH * (3 * WCin) * out1_lanes + 2 * NH * (3 * WCout) * WCout
    bytes_accessed = (4 * NH * (WCin + WCout)
                      + w_bytes * (3 * WCin * out1_lanes + 3 * WCout * WCout)
                      + 4 * (2 * WCout * Cout + (6 if has_shortcut else 4) * Cout))
    cost = pl.CostEstimate(flops=int(flops),
                           transcendentals=int((3 if has_shortcut else 2) * Cout),
                           bytes_accessed=int(bytes_accessed))

    out = pl.pallas_call(
        make_resblock_kernel(N, H, W, Cin, Cout, has_shortcut, compute_dtype),
        out_shape=jax.ShapeDtypeStruct((NH, WCout), jnp.float32),
        in_specs=[pl.BlockSpec(memory_space=pltpu.MemorySpace.VMEM)] * len(args),
        out_specs=pl.BlockSpec(memory_space=pltpu.MemorySpace.VMEM),
        compiler_params=pltpu.CompilerParams(vmem_limit_bytes=32 * 1024 * 1024),
        cost_estimate=cost,
    )(*args)

    return jnp.transpose(out.reshape(N, H, W, Cout), (0, 3, 1, 2))  # back to NCHW


# --------------------------------------------------------------------------------------
# Pure-JAX reference (independent implementation, keeps the conv biases)
# --------------------------------------------------------------------------------------
def _bn_train_ref(y_nhwc, gamma, beta):
    mean = jnp.mean(y_nhwc, axis=(0, 1, 2), keepdims=True)
    var = jnp.mean((y_nhwc - mean) ** 2, axis=(0, 1, 2), keepdims=True)
    return (y_nhwc - mean) * jax.lax.rsqrt(var + EPS) * gamma + beta


def resblock_ref(x_nchw, params):
    dn = ("NHWC", "HWIO", "NHWC")
    x = jnp.transpose(x_nchw.astype(jnp.float32), (0, 2, 3, 1))
    y = jax.lax.conv_general_dilated(x, params["w1"], (1, 1), "SAME",
                                     dimension_numbers=dn) + params["b1"]
    y = jnp.maximum(_bn_train_ref(y, params["g1"], params["be1"]), 0.0)
    y = jax.lax.conv_general_dilated(y, params["w2"], (1, 1), "SAME",
                                     dimension_numbers=dn) + params["b2"]
    y = _bn_train_ref(y, params["g2"], params["be2"])
    if x.shape[-1] != y.shape[-1]:
        s = jax.lax.conv_general_dilated(x, params["ws"][None, None], (1, 1), "SAME",
                                         dimension_numbers=dn) + params["bs"]
        s = _bn_train_ref(s, params["gs"], params["bes"])
    else:
        s = x
    out = jnp.maximum(y + s, 0.0)
    return jnp.transpose(out, (0, 3, 1, 2))


# --------------------------------------------------------------------------------------
# Deterministic parameter init
# --------------------------------------------------------------------------------------
def init_params(key, cin, cout):
    ks = jax.random.split(key, 13)
    p = {}
    p["w1"] = 0.1 * jax.random.normal(ks[0], (3, 3, cin, cout), jnp.float32)
    p["b1"] = 0.1 * jax.random.normal(ks[1], (cout,), jnp.float32)
    p["g1"] = 1.0 + 0.1 * jax.random.normal(ks[2], (cout,), jnp.float32)
    p["be1"] = 0.1 * jax.random.normal(ks[3], (cout,), jnp.float32)
    p["w2"] = 0.1 * jax.random.normal(ks[4], (3, 3, cout, cout), jnp.float32)
    p["b2"] = 0.1 * jax.random.normal(ks[5], (cout,), jnp.float32)
    p["g2"] = 1.0 + 0.1 * jax.random.normal(ks[6], (cout,), jnp.float32)
    p["be2"] = 0.1 * jax.random.normal(ks[7], (cout,), jnp.float32)
    if cin != cout:
        p["ws"] = 0.1 * jax.random.normal(ks[8], (cin, cout), jnp.float32)
        p["bs"] = 0.1 * jax.random.normal(ks[9], (cout,), jnp.float32)
        p["gs"] = 1.0 + 0.1 * jax.random.normal(ks[10], (cout,), jnp.float32)
        p["bes"] = 0.1 * jax.random.normal(ks[11], (cout,), jnp.float32)
    return p


if __name__ == "__main__":
    key = jax.random.PRNGKey(0)
    k_x1, k_x2, k_p1, k_p2 = jax.random.split(key, 4)

    cases = [
        # Case 1: in_feat != out_feat  -> 1x1 conv + BN shortcut branch
        (jax.random.normal(k_x1, (2, 4, 16, 16), jnp.float32), init_params(k_p1, 4, 8)),
        # Case 2: in_feat == out_feat  -> identity shortcut
        (jax.random.normal(k_x2, (2, 8, 16, 16), jnp.float32), init_params(k_p2, 8, 8)),
    ]

    for i, (x, p) in enumerate(cases):
        ref = resblock_ref(x, p)

        # Structural check in pure f32 (tight tolerance).
        out_f32 = jax.block_until_ready(
            resblock_forward(x, p, compute_dtype=jnp.float32))
        assert out_f32.shape == ref.shape
        err_f32 = float(jnp.max(jnp.abs(out_f32 - ref)))
        assert err_f32 < 2e-3, f"case {i}: f32 mismatch ({err_f32})"

        # Default bf16-MXU path (f32 accumulation); looser tolerance for bf16 rounding.
        out_bf16 = jax.block_until_ready(
            resblock_forward(x, p, compute_dtype=jnp.bfloat16))
        err_bf16 = float(jnp.max(jnp.abs(out_bf16 - ref) / (1.0 + jnp.abs(ref))))
        assert err_bf16 < 5e-2, f"case {i}: bf16 mismatch ({err_bf16})"

    print("KERNEL_OK")
</pallas_src>

<mosaic_0001>
module attributes {stable_mosaic.version = 11 : i64} {
  func.func @kernel(%arg0: memref<32x64xf32, #tpu.memory_space<vmem>>, %arg1: memref<192x256xf32, #tpu.memory_space<vmem>>, %arg2: memref<384x128xf32, #tpu.memory_space<vmem>>, %arg3: memref<1x8xf32, #tpu.memory_space<vmem>>, %arg4: memref<1x8xf32, #tpu.memory_space<vmem>>, %arg5: memref<1x8xf32, #tpu.memory_space<vmem>>, %arg6: memref<1x8xf32, #tpu.memory_space<vmem>>, %arg7: memref<1x8xf32, #tpu.memory_space<vmem>>, %arg8: memref<1x8xf32, #tpu.memory_space<vmem>>, %arg9: memref<128x8xf32, #tpu.memory_space<vmem>>, %arg10: memref<8x128xf32, #tpu.memory_space<vmem>>, %arg11: memref<32x128xf32, #tpu.memory_space<vmem>>) attributes {dimension_semantics = [], scalar_prefetch = 0 : i64, scratch_operands = 0 : i64, tpu.core_type = #tpu.core_type<tc>} {
    %c0 = arith.constant 0 : index
    %c0_0 = arith.constant 0 : index
    %0 = vector.load %arg9[%c0, %c0_0] : memref<128x8xf32, #tpu.memory_space<vmem>>, vector<128x8xf32>
    %c0_1 = arith.constant 0 : index
    %c0_2 = arith.constant 0 : index
    %1 = vector.load %arg10[%c0_1, %c0_2] : memref<8x128xf32, #tpu.memory_space<vmem>>, vector<8x128xf32>
    %c0_3 = arith.constant 0 : index
    %c0_4 = arith.constant 0 : index
    %2 = vector.load %arg0[%c0_3, %c0_4] : memref<32x64xf32, #tpu.memory_space<vmem>>, vector<32x64xf32>
    %3 = tpu.iota {dimensions = array<i32: 0>} : vector<32x1xi32>
    %c16_i32 = arith.constant 16 : i32
    %c0_i32 = arith.constant 0 : i32
    %4 = arith.cmpi eq, %c16_i32, %c0_i32 : i32
    %c1_i32 = arith.constant 1 : i32
    %5 = arith.select %4, %c1_i32, %c16_i32 : i32
    %6 = vector.broadcast %5 : i32 to vector<32x1xi32>
    %7 = arith.remsi %3, %6 : vector<32x1xi32>
    %c0_i32_5 = arith.constant 0 : i32
    %8 = vector.broadcast %c0_i32_5 : i32 to vector<32x1xi32>
    %9 = arith.cmpi ne, %7, %8 : vector<32x1xi32>
    %c0_i32_6 = arith.constant 0 : i32
    %10 = vector.broadcast %c0_i32_6 : i32 to vector<32x1xi32>
    %11 = arith.cmpi slt, %7, %10 : vector<32x1xi32>
    %c0_i32_7 = arith.constant 0 : i32
    %12 = arith.cmpi slt, %5, %c0_i32_7 : i32
    %13 = vector.broadcast %12 : i1 to vector<32x1xi1>
    %14 = vector.broadcast %13 : vector<32x1xi1> to vector<32x1xi1>
    %15 = arith.xori %11, %14 : vector<32x1xi1>
    %16 = arith.andi %15, %9 : vector<32x1xi1>
    %17 = vector.broadcast %5 : i32 to vector<32x1xi32>
    %18 = arith.addi %7, %17 : vector<32x1xi32>
    %19 = arith.select %16, %18, %7 : vector<32x1xi1>, vector<32x1xi32>
    %c0_i32_8 = arith.constant 0 : i32
    %20 = vector.broadcast %c0_i32_8 : i32 to vector<32x1xi32>
    %21 = arith.cmpi eq, %19, %20 : vector<32x1xi32>
    %c15_i32 = arith.constant 15 : i32
    %22 = vector.broadcast %c15_i32 : i32 to vector<32x1xi32>
    %23 = arith.cmpi eq, %19, %22 : vector<32x1xi32>
    %c1_i32_9 = arith.constant 1 : i32
    %24 = tpu.dynamic_rotate %2 by %c1_i32_9 dim 0 : vector<32x64xf32>, i32 -> vector<32x64xf32>
    %cst = arith.constant 0.000000e+00 : f32
    %25 = vector.shape_cast %21 : vector<32x1xi1> to vector<32x1xi1>
    %26 = vector.broadcast %25 : vector<32x1xi1> to vector<32x64xi1>
    %27 = vector.broadcast %cst : f32 to vector<32x64xf32>
    %28 = arith.select %26, %27, %24 : vector<32x64xi1>, vector<32x64xf32>
    %c31_i32 = arith.constant 31 : i32
    %29 = tpu.dynamic_rotate %2 by %c31_i32 dim 0 : vector<32x64xf32>, i32 -> vector<32x64xf32>
    %cst_10 = arith.constant 0.000000e+00 : f32
    %30 = vector.shape_cast %23 : vector<32x1xi1> to vector<32x1xi1>
    %31 = vector.broadcast %30 : vector<32x1xi1> to vector<32x64xi1>
    %32 = vector.broadcast %cst_10 : f32 to vector<32x64xf32>
    %33 = arith.select %31, %32, %29 : vector<32x64xi1>, vector<32x64xf32>
    %34 = tpu.concatenate %28, %2, %33 in 1 : vector<32x64xf32>, vector<32x64xf32>, vector<32x64xf32> -> vector<32x192xf32>
    %c0_11 = arith.constant 0 : index
    %c0_12 = arith.constant 0 : index
    %35 = vector.load %arg1[%c0_11, %c0_12] : memref<192x256xf32, #tpu.memory_space<vmem>>, vector<192x256xf32>
    %cst_13 = arith.constant dense<0.000000e+00> : vector<32x256xf32>
    %36 = tpu.matmul %34, %35, %cst_13 {dimension_numbers = #tpu.dot_dimension_numbers<[1], [0], [0], [1], [0, 0, 1, 1], [], []>} : vector<32x192xf32>, vector<192x256xf32>, vector<32x256xf32> -> vector<32x256xf32>
    %37 = vector.extract_strided_slice %36 {offsets = [0, 0], sizes = [32, 128], strides = [1, 1]} : vector<32x256xf32> to vector<32x128xf32>
    %c0_14 = arith.constant 0 : index
    %c0_15 = arith.constant 0 : index
    %38 = vector.load %arg3[%c0_14, %c0_15] : memref<1x8xf32, #tpu.memory_space<vmem>>, vector<1x8xf32>
    %c0_16 = arith.constant 0 : index
    %c0_17 = arith.constant 0 : index
    %39 = vector.load %arg4[%c0_16, %c0_17] : memref<1x8xf32, #tpu.memory_space<vmem>>, vector<1x8xf32>
    %cst_18 = arith.constant dense<0.000000e+00> : vector<128xf32>
    %40 = vector.multi_reduction <add>, %37, %cst_18 [0] : vector<32x128xf32> to vector<128xf32>
    %41 = vector.shape_cast %40 : vector<128xf32> to vector<1x128xf32>
    %42 = arith.mulf %37, %37 : vector<32x128xf32>
    %cst_19 = arith.constant dense<0.000000e+00> : vector<128xf32>
    %43 = vector.multi_reduction <add>, %42, %cst_19 [0] : vector<32x128xf32> to vector<128xf32>
    %44 = vector.shape_cast %43 : vector<128xf32> to vector<1x128xf32>
    %45 = tpu.concatenate %41, %44 in 0 : vector<1x128xf32>, vector<1x128xf32> -> vector<2x128xf32>
    %cst_20 = arith.constant dense<0.000000e+00> : vector<2x8xf32>
    %46 = tpu.matmul %45, %0, %cst_20 {dimension_numbers = #tpu.dot_dimension_numbers<[1], [0], [0], [1], [0, 0, 1, 1], [], []>} : vector<2x128xf32>, vector<128x8xf32>, vector<2x8xf32> -> vector<2x8xf32>
    %47 = vector.extract_strided_slice %46 {offsets = [0, 0], sizes = [1, 8], strides = [1, 1]} : vector<2x8xf32> to vector<1x8xf32>
    %cst_21 = arith.constant 0.001953125 : f32
    %48 = vector.broadcast %cst_21 : f32 to vector<1x8xf32>
    %49 = arith.mulf %47, %48 : vector<1x8xf32>
    %50 = vector.extract_strided_slice %46 {offsets = [1, 0], sizes = [1, 8], strides = [1, 1]} : vector<2x8xf32> to vector<1x8xf32>
    %cst_22 = arith.constant 0.001953125 : f32
    %51 = vector.broadcast %cst_22 : f32 to vector<1x8xf32>
    %52 = arith.mulf %50, %51 : vector<1x8xf32>
    %53 = arith.mulf %49, %49 : vector<1x8xf32>
    %54 = arith.subf %52, %53 : vector<1x8xf32>
    %cst_23 = arith.constant 9.99999974E-6 : f32
    %55 = vector.broadcast %cst_23 : f32 to vector<1x8xf32>
    %56 = arith.addf %54, %55 : vector<1x8xf32>
    %57 = math.rsqrt %56 : vector<1x8xf32>
    %58 = arith.mulf %38, %57 : vector<1x8xf32>
    %59 = arith.mulf %49, %58 : vector<1x8xf32>
    %60 = arith.subf %39, %59 : vector<1x8xf32>
    %61 = tpu.concatenate %58, %60 in 0 : vector<1x8xf32>, vector<1x8xf32> -> vector<2x8xf32>
    %cst_24 = arith.constant dense<0.000000e+00> : vector<2x128xf32>
    %62 = tpu.matmul %61, %1, %cst_24 {dimension_numbers = #tpu.dot_dimension_numbers<[1], [0], [0], [1], [0, 0, 1, 1], [], []>} : vector<2x8xf32>, vector<8x128xf32>, vector<2x128xf32> -> vector<2x128xf32>
    %63 = vector.extract_strided_slice %62 {offsets = [0, 0], sizes = [1, 128], strides = [1, 1]} : vector<2x128xf32> to vector<1x128xf32>
    %64 = vector.broadcast %63 : vector<1x128xf32> to vector<32x128xf32>
    %65 = arith.mulf %37, %64 : vector<32x128xf32>
    %66 = vector.extract_strided_slice %62 {offsets = [1, 0], sizes = [1, 128], strides = [1, 1]} : vector<2x128xf32> to vector<1x128xf32>
    %67 = vector.broadcast %66 : vector<1x128xf32> to vector<32x128xf32>
    %68 = arith.addf %65, %67 : vector<32x128xf32>
    %cst_25 = arith.constant 0.000000e+00 : f32
    %69 = vector.broadcast %cst_25 : f32 to vector<32x128xf32>
    %70 = arith.maximumf %68, %69 : vector<32x128xf32>
    %c1_i32_26 = arith.constant 1 : i32
    %71 = tpu.dynamic_rotate %70 by %c1_i32_26 dim 0 : vector<32x128xf32>, i32 -> vector<32x128xf32>
    %cst_27 = arith.constant 0.000000e+00 : f32
    %72 = vector.shape_cast %21 : vector<32x1xi1> to vector<32x1xi1>
    %73 = vector.broadcast %72 : vector<32x1xi1> to vector<32x128xi1>
    %74 = vector.broadcast %cst_27 : f32 to vector<32x128xf32>
    %75 = arith.select %73, %74, %71 : vector<32x128xi1>, vector<32x128xf32>
    %c31_i32_28 = arith.constant 31 : i32
    %76 = tpu.dynamic_rotate %70 by %c31_i32_28 dim 0 : vector<32x128xf32>, i32 -> vector<32x128xf32>
    %cst_29 = arith.constant 0.000000e+00 : f32
    %77 = vector.shape_cast %23 : vector<32x1xi1> to vector<32x1xi1>
    %78 = vector.broadcast %77 : vector<32x1xi1> to vector<32x128xi1>
    %79 = vector.broadcast %cst_29 : f32 to vector<32x128xf32>
    %80 = arith.select %78, %79, %76 : vector<32x128xi1>, vector<32x128xf32>
    %81 = tpu.concatenate %75, %70, %80 in 1 : vector<32x128xf32>, vector<32x128xf32>, vector<32x128xf32> -> vector<32x384xf32>
    %c0_30 = arith.constant 0 : index
    %c0_31 = arith.constant 0 : index
    %82 = vector.load %arg2[%c0_30, %c0_31] : memref<384x128xf32, #tpu.memory_space<vmem>>, vector<384x128xf32>
    %cst_32 = arith.constant dense<0.000000e+00> : vector<32x128xf32>
    %83 = tpu.matmul %81, %82, %cst_32 {dimension_numbers = #tpu.dot_dimension_numbers<[1], [0], [0], [1], [0, 0, 1, 1], [], []>} : vector<32x384xf32>, vector<384x128xf32>, vector<32x128xf32> -> vector<32x128xf32>
    %c0_33 = arith.constant 0 : index
    %c0_34 = arith.constant 0 : index
    %84 = vector.load %arg5[%c0_33, %c0_34] : memref<1x8xf32, #tpu.memory_space<vmem>>, vector<1x8xf32>
    %c0_35 = arith.constant 0 : index
    %c0_36 = arith.constant 0 : index
    %85 = vector.load %arg6[%c0_35, %c0_36] : memref<1x8xf32, #tpu.memory_space<vmem>>, vector<1x8xf32>
    %cst_37 = arith.constant dense<0.000000e+00> : vector<128xf32>
    %86 = vector.multi_reduction <add>, %83, %cst_37 [0] : vector<32x128xf32> to vector<128xf32>
    %87 = vector.shape_cast %86 : vector<128xf32> to vector<1x128xf32>
    %88 = arith.mulf %83, %83 : vector<32x128xf32>
    %cst_38 = arith.constant dense<0.000000e+00> : vector<128xf32>
    %89 = vector.multi_reduction <add>, %88, %cst_38 [0] : vector<32x128xf32> to vector<128xf32>
    %90 = vector.shape_cast %89 : vector<128xf32> to vector<1x128xf32>
    %91 = tpu.concatenate %87, %90 in 0 : vector<1x128xf32>, vector<1x128xf32> -> vector<2x128xf32>
    %cst_39 = arith.constant dense<0.000000e+00> : vector<2x8xf32>
    %92 = tpu.matmul %91, %0, %cst_39 {dimension_numbers = #tpu.dot_dimension_numbers<[1], [0], [0], [1], [0, 0, 1, 1], [], []>} : vector<2x128xf32>, vector<128x8xf32>, vector<2x8xf32> -> vector<2x8xf32>
    %93 = vector.extract_strided_slice %92 {offsets = [0, 0], sizes = [1, 8], strides = [1, 1]} : vector<2x8xf32> to vector<1x8xf32>
    %cst_40 = arith.constant 0.001953125 : f32
    %94 = vector.broadcast %cst_40 : f32 to vector<1x8xf32>
    %95 = arith.mulf %93, %94 : vector<1x8xf32>
    %96 = vector.extract_strided_slice %92 {offsets = [1, 0], sizes = [1, 8], strides = [1, 1]} : vector<2x8xf32> to vector<1x8xf32>
    %cst_41 = arith.constant 0.001953125 : f32
    %97 = vector.broadcast %cst_41 : f32 to vector<1x8xf32>
    %98 = arith.mulf %96, %97 : vector<1x8xf32>
    %99 = arith.mulf %95, %95 : vector<1x8xf32>
    %100 = arith.subf %98, %99 : vector<1x8xf32>
    %cst_42 = arith.constant 9.99999974E-6 : f32
    %101 = vector.broadcast %cst_42 : f32 to vector<1x8xf32>
    %102 = arith.addf %100, %101 : vector<1x8xf32>
    %103 = math.rsqrt %102 : vector<1x8xf32>
    %104 = arith.mulf %84, %103 : vector<1x8xf32>
    %105 = arith.mulf %95, %104 : vector<1x8xf32>
    %106 = arith.subf %85, %105 : vector<1x8xf32>
    %107 = tpu.concatenate %104, %106 in 0 : vector<1x8xf32>, vector<1x8xf32> -> vector<2x8xf32>
    %cst_43 = arith.constant dense<0.000000e+00> : vector<2x128xf32>
    %108 = tpu.matmul %107, %1, %cst_43 {dimension_numbers = #tpu.dot_dimension_numbers<[1], [0], [0], [1], [0, 0, 1, 1], [], []>} : vector<2x8xf32>, vector<8x128xf32>, vector<2x128xf32> -> vector<2x128xf32>
    %109 = vector.extract_strided_slice %108 {offsets = [0, 0], sizes = [1, 128], strides = [1, 1]} : vector<2x128xf32> to vector<1x128xf32>
    %110 = vector.broadcast %109 : vector<1x128xf32> to vector<32x128xf32>
    %111 = arith.mulf %83, %110 : vector<32x128xf32>
    %112 = vector.extract_strided_slice %108 {offsets = [1, 0], sizes = [1, 128], strides = [1, 1]} : vector<2x128xf32> to vector<1x128xf32>
    %113 = vector.broadcast %112 : vector<1x128xf32> to vector<32x128xf32>
    %114 = arith.addf %111, %113 : vector<32x128xf32>
    %115 = vector.extract_strided_slice %36 {offsets = [0, 128], sizes = [32, 128], strides = [1, 1]} : vector<32x256xf32> to vector<32x128xf32>
    %c0_44 = arith.constant 0 : index
    %c0_45 = arith.constant 0 : index
    %116 = vector.load %arg7[%c0_44, %c0_45] : memref<1x8xf32, #tpu.memory_space<vmem>>, vector<1x8xf32>
    %c0_46 = arith.constant 0 : index
    %c0_47 = arith.constant 0 : index
    %117 = vector.load %arg8[%c0_46, %c0_47] : memref<1x8xf32, #tpu.memory_space<vmem>>, vector<1x8xf32>
    %cst_48 = arith.constant dense<0.000000e+00> : vector<128xf32>
    %118 = vector.multi_reduction <add>, %115, %cst_48 [0] : vector<32x128xf32> to vector<128xf32>
    %119 = vector.shape_cast %118 : vector<128xf32> to vector<1x128xf32>
    %120 = arith.mulf %115, %115 : vector<32x128xf32>
    %cst_49 = arith.constant dense<0.000000e+00> : vector<128xf32>
    %121 = vector.multi_reduction <add>, %120, %cst_49 [0] : vector<32x128xf32> to vector<128xf32>
    %122 = vector.shape_cast %121 : vector<128xf32> to vector<1x128xf32>
    %123 = tpu.concatenate %119, %122 in 0 : vector<1x128xf32>, vector<1x128xf32> -> vector<2x128xf32>
    %cst_50 = arith.constant dense<0.000000e+00> : vector<2x8xf32>
    %124 = tpu.matmul %123, %0, %cst_50 {dimension_numbers = #tpu.dot_dimension_numbers<[1], [0], [0], [1], [0, 0, 1, 1], [], []>} : vector<2x128xf32>, vector<128x8xf32>, vector<2x8xf32> -> vector<2x8xf32>
    %125 = vector.extract_strided_slice %124 {offsets = [0, 0], sizes = [1, 8], strides = [1, 1]} : vector<2x8xf32> to vector<1x8xf32>
    %cst_51 = arith.constant 0.001953125 : f32
    %126 = vector.broadcast %cst_51 : f32 to vector<1x8xf32>
    %127 = arith.mulf %125, %126 : vector<1x8xf32>
    %128 = vector.extract_strided_slice %124 {offsets = [1, 0], sizes = [1, 8], strides = [1, 1]} : vector<2x8xf32> to vector<1x8xf32>
    %cst_52 = arith.constant 0.001953125 : f32
    %129 = vector.broadcast %cst_52 : f32 to vector<1x8xf32>
    %130 = arith.mulf %128, %129 : vector<1x8xf32>
    %131 = arith.mulf %127, %127 : vector<1x8xf32>
    %132 = arith.subf %130, %131 : vector<1x8xf32>
    %cst_53 = arith.constant 9.99999974E-6 : f32
    %133 = vector.broadcast %cst_53 : f32 to vector<1x8xf32>
    %134 = arith.addf %132, %133 : vector<1x8xf32>
    %135 = math.rsqrt %134 : vector<1x8xf32>
    %136 = arith.mulf %116, %135 : vector<1x8xf32>
    %137 = arith.mulf %127, %136 : vector<1x8xf32>
    %138 = arith.subf %117, %137 : vector<1x8xf32>
    %139 = tpu.concatenate %136, %138 in 0 : vector<1x8xf32>, vector<1x8xf32> -> vector<2x8xf32>
    %cst_54 = arith.constant dense<0.000000e+00> : vector<2x128xf32>
    %140 = tpu.matmul %139, %1, %cst_54 {dimension_numbers = #tpu.dot_dimension_numbers<[1], [0], [0], [1], [0, 0, 1, 1], [], []>} : vector<2x8xf32>, vector<8x128xf32>, vector<2x128xf32> -> vector<2x128xf32>
    %141 = vector.extract_strided_slice %140 {offsets = [0, 0], sizes = [1, 128], strides = [1, 1]} : vector<2x128xf32> to vector<1x128xf32>
    %142 = vector.broadcast %141 : vector<1x128xf32> to vector<32x128xf32>
    %143 = arith.mulf %115, %142 : vector<32x128xf32>
    %144 = vector.extract_strided_slice %140 {offsets = [1, 0], sizes = [1, 128], strides = [1, 1]} : vector<2x128xf32> to vector<1x128xf32>
    %145 = vector.broadcast %144 : vector<1x128xf32> to vector<32x128xf32>
    %146 = arith.addf %143, %145 : vector<32x128xf32>
    %147 = arith.addf %114, %146 : vector<32x128xf32>
    %cst_55 = arith.constant 0.000000e+00 : f32
    %148 = vector.broadcast %cst_55 : f32 to vector<32x128xf32>
    %149 = arith.maximumf %147, %148 : vector<32x128xf32>
    %c0_56 = arith.constant 0 : index
    %c0_57 = arith.constant 0 : index
    %150 = vector.load %arg11[%c0_56, %c0_57] : memref<32x128xf32, #tpu.memory_space<vmem>>, vector<32x128xf32>
    tpu.vector_store %arg11[%c0_56, %c0_57], %149 {strides = array<i32>} : memref<32x128xf32, #tpu.memory_space<vmem>>, vector<32x128xf32>,
    return
  }
}

</mosaic_0001>

<llo_original>
// kernel: tile.9
$region0: #{tile.9}
  %s0 = inlined_call_operand.vmem [shape: f32[16,8,8], index: 0, kind: input, shape index: {}]
  %s1 = inlined_call_operand.vmem [shape: f32[128,8], index: 1, kind: output, shape index: {}]
  %s2 = smov 3
  %v3 = vld [vmem:[%s0] ss:$16 sm:%s2]
  %s4 = smov 12
  %v5 = vld [vmem:[%s0] ss:$16 sm:%s4]
  %vm6 = vcmask 1043458
  %v7 = vsel %vm6, %v5, %v3
  %s8 = smov 48
  %v9 = vld [vmem:[%s0] ss:$16 sm:%s8]
  %vm10 = vcmask 1045508
  %v11 = vsel %vm10, %v9, %v7
  %s12 = smov 192
  %v13 = vld [vmem:[%s0] ss:$16 sm:%s12]
  %vm14 = vcmask 1047558
  %v15 = vsel %vm14, %v13, %v11
  %vm16 = vcmask 64512
  %17 = vst.msk [vmem:[%s1] sm:$0xff] %vm16, %v15
  %s18 = scalar_lea.vmem %s0, 15
  %s19 = smov 3
  %v20 = vld [vmem:[%s18] ss:$16 sm:%s19]
  %s21 = scalar_lea.vmem %s0, 15
  %s22 = smov 12
  %v23 = vld [vmem:[%s21] ss:$16 sm:%s22]
  %vm24 = vcmask 1043458
  %v25 = vsel %vm24, %v23, %v20
  %s26 = scalar_lea.vmem %s0, 15
  %s27 = smov 48
  %v28 = vld [vmem:[%s26] ss:$16 sm:%s27]
  %vm29 = vcmask 1045508
  %v30 = vsel %vm29, %v28, %v25
  %s31 = scalar_lea.vmem %s0, 15
  %s32 = smov 192
  %v33 = vld [vmem:[%s31] ss:$16 sm:%s32]
  %vm34 = vcmask 1047558
  %v35 = vsel %vm34, %v33, %v30
  %36 = vrot.lane.b32.xlu0 %v35, 120
  %v37 = vpop.permute.xlu0 %36
  %vm38 = vcmask 1048512
  %39 = vst.msk [vmem:[%s1] sm:$0xff] %vm38, %v37
  %s40 = scalar_lea.vmem %s0, 14
  %s41 = smov 3
  %v42 = vld [vmem:[%s40] ss:$16 sm:%s41]
  %s43 = scalar_lea.vmem %s0, 14
  %s44 = smov 12
  %v45 = vld [vmem:[%s43] ss:$16 sm:%s44]
  %vm46 = vcmask 1043458
  %v47 = vsel %vm46, %v45, %v42
  %s48 = scalar_lea.vmem %s0, 14
  %s49 = smov 48
  %v50 = vld [vmem:[%s48] ss:$16 sm:%s49]
  %vm51 = vcmask 1045508
  %v52 = vsel %vm51, %v50, %v47
  %s53 = scalar_lea.vmem %s0, 14
  %s54 = smov 192
  %v55 = vld [vmem:[%s53] ss:$16 sm:%s54]
  %vm56 = vcmask 1047558
  %v57 = vsel %vm56, %v55, %v52
  %58 = vrot.lane.b32.xlu0 %v57, 112
  %v59 = vpop.permute.xlu0 %58
  %vm60 = vcmask 982912
  %61 = vst.msk [vmem:[%s1] sm:$0xff] %vm60, %v59
  %s62 = scalar_lea.vmem %s0, 13
  %s63 = smov 3
  %v64 = vld [vmem:[%s62] ss:$16 sm:%s63]
  %s65 = scalar_lea.vmem %s0, 13
  %s66 = smov 12
  %v67 = vld [vmem:[%s65] ss:$16 sm:%s66]
  %vm68 = vcmask 1043458
  %v69 = vsel %vm68, %v67, %v64
  %s70 = scalar_lea.vmem %s0, 13
  %s71 = smov 48
  %v72 = vld [vmem:[%s70] ss:$16 sm:%s71]
  %vm73 = vcmask 1045508
  %v74 = vsel %vm73, %v72, %v69
  %s75 = scalar_lea.vmem %s0, 13
  %s76 = smov 192
  %v77 = vld [vmem:[%s75] ss:$16 sm:%s76]
  %vm78 = vcmask 1047558
  %v79 = vsel %vm78, %v77, %v74
  %80 = vrot.lane.b32.xlu0 %v79, 104
  %v81 = vpop.permute.xlu0 %80
  %vm82 = vcmask 917312
  %83 = vst.msk [vmem:[%s1] sm:$0xff] %vm82, %v81
  %s84 = scalar_lea.vmem %s0, 12
  %s85 = smov 3
  %v86 = vld [vmem:[%s84] ss:$16 sm:%s85]
  %s87 = scalar_lea.vmem %s0, 12
  %s88 = smov 12
  %v89 = vld [vmem:[%s87] ss:$16 sm:%s88]
  %vm90 = vcmask 1043458
  %v91 = vsel %vm90, %v89, %v86
  %s92 = scalar_lea.vmem %s0, 12
  %s93 = smov 48
  %v94 = vld [vmem:[%s92] ss:$16 sm:%s93]
  %vm95 = vcmask 1045508
  %v96 = vsel %vm95, %v94, %v91
  %s97 = scalar_lea.vmem %s0, 12
  %s98 = smov 192
  %v99 = vld [vmem:[%s97] ss:$16 sm:%s98]
  %vm100 = vcmask 1047558
  %v101 = vsel %vm100, %v99, %v96
  %102 = vrot.lane.b32.xlu0 %v101, 96
  %v103 = vpop.permute.xlu0 %102
  %vm104 = vcmask 851712
  %105 = vst.msk [vmem:[%s1] sm:$0xff] %vm104, %v103
  %s106 = scalar_lea.vmem %s0, 11
  %s107 = smov 3
  %v108 = vld [vmem:[%s106] ss:$16 sm:%s107]
  %s109 = scalar_lea.vmem %s0, 11
  %s110 = smov 12
  %v111 = vld [vmem:[%s109] ss:$16 sm:%s110]
  %vm112 = vcmask 1043458
  %v113 = vsel %vm112, %v111, %v108
  %s114 = scalar_lea.vmem %s0, 11
  %s115 = smov 48
  %v116 = vld [vmem:[%s114] ss:$16 sm:%s115]
  %vm117 = vcmask 1045508
  %v118 = vsel %vm117, %v116, %v113
  %s119 = scalar_lea.vmem %s0, 11
  %s120 = smov 192
  %v121 = vld [vmem:[%s119] ss:$16 sm:%s120]
  %vm122 = vcmask 1047558
  %v123 = vsel %vm122, %v121, %v118
  %124 = vrot.lane.b32.xlu0 %v123, 88
  %v125 = vpop.permute.xlu0 %124
  %vm126 = vcmask 786112
  %127 = vst.msk [vmem:[%s1] sm:$0xff] %vm126, %v125
  %s128 = scalar_lea.vmem %s0, 10
  %s129 = smov 3
  %v130 = vld [vmem:[%s128] ss:$16 sm:%s129]
  %s131 = scalar_lea.vmem %s0, 10
  %s132 = smov 12
  %v133 = vld [vmem:[%s131] ss:$16 sm:%s132]
  %vm134 = vcmask 1043458
  %v135 = vsel %vm134, %v133, %v130
  %s136 = scalar_lea.vmem %s0, 10
  %s137 = smov 48
  %v138 = vld [vmem:[%s136] ss:$16 sm:%s137]
  %vm139 = vcmask 1045508
  %v140 = vsel %vm139, %v138, %v135
  %s141 = scalar_lea.vmem %s0, 10
  %s142 = smov 192
  %v143 = vld [vmem:[%s141] ss:$16 sm:%s142]
  %vm144 = vcmask 1047558
  %v145 = vsel %vm144, %v143, %v140
  %146 = vrot.lane.b32.xlu0 %v145, 80
  %v147 = vpop.permute.xlu0 %146
  %vm148 = vcmask 720512
  %149 = vst.msk [vmem:[%s1] sm:$0xff] %vm148, %v147
  %s150 = scalar_lea.vmem %s0, 9
  %s151 = smov 3
  %v152 = vld [vmem:[%s150] ss:$16 sm:%s151]
  %s153 = scalar_lea.vmem %s0, 9
  %s154 = smov 12
  %v155 = vld [vmem:[%s153] ss:$16 sm:%s154]
  %vm156 = vcmask 1043458
  %v157 = vsel %vm156, %v155, %v152
  %s158 = scalar_lea.vmem %s0, 9
  %s159 = smov 48
  %v160 = vld [vmem:[%s158] ss:$16 sm:%s159]
  %vm161 = vcmask 1045508
  %v162 = vsel %vm161, %v160, %v157
  %s163 = scalar_lea.vmem %s0, 9
  %s164 = smov 192
  %v165 = vld [vmem:[%s163] ss:$16 sm:%s164]
  %vm166 = vcmask 1047558
  %v167 = vsel %vm166, %v165, %v162
  %168 = vrot.lane.b32.xlu0 %v167, 72
  %v169 = vpop.permute.xlu0 %168
  %vm170 = vcmask 654912
  %171 = vst.msk [vmem:[%s1] sm:$0xff] %vm170, %v169
  %s172 = scalar_lea.vmem %s0, 8
  %s173 = smov 3
  %v174 = vld [vmem:[%s172] ss:$16 sm:%s173]
  %s175 = scalar_lea.vmem %s0, 8
  %s176 = smov 12
  %v177 = vld [vmem:[%s175] ss:$16 sm:%s176]
  %vm178 = vcmask 1043458
  %v179 = vsel %vm178, %v177, %v174
  %s180 = scalar_lea.vmem %s0, 8
  %s181 = smov 48
  %v182 = vld [vmem:[%s180] ss:$16 sm:%s181]
  %vm183 = vcmask 1045508
  %v184 = vsel %vm183, %v182, %v179
  %s185 = scalar_lea.vmem %s0, 8
  %s186 = smov 192
  %v187 = vld [vmem:[%s185] ss:$16 sm:%s186]
  %vm188 = vcmask 1047558
  %v189 = vsel %vm188, %v187, %v184
  %190 = vrot.lane.b32.xlu0 %v189, 64
  %v191 = vpop.permute.xlu0 %190
  %vm192 = vcmask 589312
  %193 = vst.msk [vmem:[%s1] sm:$0xff] %vm192, %v191
  %s194 = scalar_lea.vmem %s0, 7
  %s195 = smov 3
  %v196 = vld [vmem:[%s194] ss:$16 sm:%s195]
  %s197 = scalar_lea.vmem %s0, 7
  %s198 = smov 12
  %v199 = vld [vmem:[%s197] ss:$16 sm:%s198]
  %vm200 = vcmask 1043458
  %v201 = vsel %vm200, %v199, %v196
  %s202 = scalar_lea.vmem %s0, 7
  %s203 = smov 48
  %v204 = vld [vmem:[%s202] ss:$16 sm:%s203]
  %vm205 = vcmask 1045508
  %v206 = vsel %vm205, %v204, %v201
  %s207 = scalar_lea.vmem %s0, 7
  %s208 = smov 192
  %v209 = vld [vmem:[%s207] ss:$16 sm:%s208]
  %vm210 = vcmask 1047558
  %v211 = vsel %vm210, %v209, %v206
  %212 = vrot.lane.b32.xlu0 %v211, 56
  %v213 = vpop.permute.xlu0 %212
  %vm214 = vcmask 523712
  %215 = vst.msk [vmem:[%s1] sm:$0xff] %vm214, %v213
  %s216 = scalar_lea.vmem %s0, 6
  %s217 = smov 3
  %v218 = vld [vmem:[%s216] ss:$16 sm:%s217]
  %s219 = scalar_lea.vmem %s0, 6
  %s220 = smov 12
  %v221 = vld [vmem:[%s219] ss:$16 sm:%s220]
  %vm222 = vcmask 1043458
  %v223 = vsel %vm222, %v221, %v218
  %s224 = scalar_lea.vmem %s0, 6
  %s225 = smov 48
  %v226 = vld [vmem:[%s224] ss:$16 sm:%s225]
  %vm227 = vcmask 1045508
  %v228 = vsel %vm227, %v226, %v223
  %s229 = scalar_lea.vmem %s0, 6
  %s230 = smov 192
  %v231 = vld [vmem:[%s229] ss:$16 sm:%s230]
  %vm232 = vcmask 1047558
  %v233 = vsel %vm232, %v231, %v228
  %234 = vrot.lane.b32.xlu0 %v233, 48
  %v235 = vpop.permute.xlu0 %234
  %vm236 = vcmask 458112
  %237 = vst.msk [vmem:[%s1] sm:$0xff] %vm236, %v235
  %s238 = scalar_lea.vmem %s0, 5
  %s239 = smov 3
  %v240 = vld [vmem:[%s238] ss:$16 sm:%s239]
  %s241 = scalar_lea.vmem %s0, 5
  %s242 = smov 12
  %v243 = vld [vmem:[%s241] ss:$16 sm:%s242]
  %vm244 = vcmask 1043458
  %v245 = vsel %vm244, %v243, %v240
  %s246 = scalar_lea.vmem %s0, 5
  %s247 = smov 48
  %v248 = vld [vmem:[%s246] ss:$16 sm:%s247]
  %vm249 = vcmask 1045508
  %v250 = vsel %vm249, %v248, %v245
  %s251 = scalar_lea.vmem %s0, 5
  %s252 = smov 192
  %v253 = vld [vmem:[%s251] ss:$16 sm:%s252]
  %vm254 = vcmask 1047558
  %v255 = vsel %vm254, %v253, %v250
  %256 = vrot.lane.b32.xlu0 %v255, 40
  %v257 = vpop.permute.xlu0 %256
  %vm258 = vcmask 392512
  %259 = vst.msk [vmem:[%s1] sm:$0xff] %vm258, %v257
  %s260 = scalar_lea.vmem %s0, 4
  %s261 = smov 3
  %v262 = vld [vmem:[%s260] ss:$16 sm:%s261]
  %s263 = scalar_lea.vmem %s0, 4
  %s264 = smov 12
  %v265 = vld [vmem:[%s263] ss:$16 sm:%s264]
  %vm266 = vcmask 1043458
  %v267 = vsel %vm266, %v265, %v262
  %s268 = scalar_lea.vmem %s0, 4
  %s269 = smov 48
  %v270 = vld [vmem:[%s268] ss:$16 sm:%s269]
  %vm271 = vcmask 1045508
  %v272 = vsel %vm271, %v270, %v267
  %s273 = scalar_lea.vmem %s0, 4
  %s274 = smov 192
  %v275 = vld [vmem:[%s273] ss:$16 sm:%s274]
  %vm276 = vcmask 1047558
  %v277 = vsel %vm276, %v275, %v272
  %278 = vrot.lane.b32.xlu0 %v277, 32
  %v279 = vpop.permute.xlu0 %278
  %vm280 = vcmask 326912
  %281 = vst.msk [vmem:[%s1] sm:$0xff] %vm280, %v279
  %s282 = scalar_lea.vmem %s0, 3
  %s283 = smov 3
  %v284 = vld [vmem:[%s282] ss:$16 sm:%s283]
  %s285 = scalar_lea.vmem %s0, 3
  %s286 = smov 12
  %v287 = vld [vmem:[%s285] ss:$16 sm:%s286]
  %vm288 = vcmask 1043458
  %v289 = vsel %vm288, %v287, %v284
  %s290 = scalar_lea.vmem %s0, 3
  %s291 = smov 48
  %v292 = vld [vmem:[%s290] ss:$16 sm:%s291]
  %vm293 = vcmask 1045508
  %v294 = vsel %vm293, %v292, %v289
  %s295 = scalar_lea.vmem %s0, 3
  %s296 = smov 192
  %v297 = vld [vmem:[%s295] ss:$16 sm:%s296]
  %vm298 = vcmask 1047558
  %v299 = vsel %vm298, %v297, %v294
  %300 = vrot.lane.b32.xlu0 %v299, 24
  %v301 = vpop.permute.xlu0 %300
  %vm302 = vcmask 261312
  %303 = vst.msk [vmem:[%s1] sm:$0xff] %vm302, %v301
  %s304 = scalar_lea.vmem %s0, 2
  %s305 = smov 3
  %v306 = vld [vmem:[%s304] ss:$16 sm:%s305]
  %s307 = scalar_lea.vmem %s0, 2
  %s308 = smov 12
  %v309 = vld [vmem:[%s307] ss:$16 sm:%s308]
  %vm310 = vcmask 1043458
  %v311 = vsel %vm310, %v309, %v306
  %s312 = scalar_lea.vmem %s0, 2
  %s313 = smov 48
  %v314 = vld [vmem:[%s312] ss:$16 sm:%s313]
  %vm315 = vcmask 1045508
  %v316 = vsel %vm315, %v314, %v311
  %s317 = scalar_lea.vmem %s0, 2
  %s318 = smov 192
  %v319 = vld [vmem:[%s317] ss:$16 sm:%s318]
  %vm320 = vcmask 1047558
  %v321 = vsel %vm320, %v319, %v316
  %322 = vrot.lane.b32.xlu0 %v321, 16
  %v323 = vpop.permute.xlu0 %322
  %vm324 = vcmask 195712
  %325 = vst.msk [vmem:[%s1] sm:$0xff] %vm324, %v323
  %s326 = scalar_lea.vmem %s0, 1
  %s327 = smov 3
  %v328 = vld [vmem:[%s326] ss:$16 sm:%s327]
  %s329 = scalar_lea.vmem %s0, 1
  %s330 = smov 12
  %v331 = vld [vmem:[%s329] ss:$16 sm:%s330]
  %vm332 = vcmask 1043458
  %v333 = vsel %vm332, %v331, %v328
  %s334 = scalar_lea.vmem %s0, 1
  %s335 = smov 48
  %v336 = vld [vmem:[%s334] ss:$16 sm:%s335]
  %vm337 = vcmask 1045508
  %v338 = vsel %vm337, %v336, %v333
  %s339 = scalar_lea.vmem %s0, 1
  %s340 = smov 192
  %v341 = vld [vmem:[%s339] ss:$16 sm:%s340]
  %vm342 = vcmask 1047558
  %v343 = vsel %vm342, %v341, %v338
  %344 = vrot.lane.b32.xlu0 %v343, 8
  %v345 = vpop.permute.xlu0 %344
  %vm346 = vcmask 130112
  %347 = vst.msk [vmem:[%s1] sm:$0xff] %vm346, %v345

// kernel: resblock_forward.1
$region0: #{resblock_forward.1}
  #allocation0 [shape = 'u32[]', space=smem, size = 0x4, offset = 0x4, fixed_abs, tag = 'smem constant byte address 0x4 - core index']
  #allocation1 [shape = 'u32[144,128]{1,0:T(1,128)}', space=vmem, size = 0x12000, scoped, tag = 'internal scratch']
  %s0 = inlined_call_operand.vmem [shape: f32[32,64], index: 0, kind: input, shape index: {}]
  %s1 = inlined_call_operand.vmem [shape: f32[192,256], index: 1, kind: input, shape index: {}]
  %s2 = inlined_call_operand.vmem [shape: f32[384,128], index: 2, kind: input, shape index: {}]
  %s3 = inlined_call_operand.vmem [shape: f32[1,8], index: 3, kind: input, shape index: {}]
  %s4 = inlined_call_operand.vmem [shape: f32[1,8], index: 4, kind: input, shape index: {}]
  %s5 = inlined_call_operand.vmem [shape: f32[1,8], index: 5, kind: input, shape index: {}]
  %s6 = inlined_call_operand.vmem [shape: f32[1,8], index: 6, kind: input, shape index: {}]
  %s7 = inlined_call_operand.vmem [shape: f32[1,8], index: 7, kind: input, shape index: {}]
  %s8 = inlined_call_operand.vmem [shape: f32[1,8], index: 8, kind: input, shape index: {}]
  %s9 = inlined_call_operand.vmem [shape: f32[128,8], index: 9, kind: input, shape index: {}]
  %s10 = inlined_call_operand.vmem [shape: f32[8,128], index: 10, kind: input, shape index: {}]
  %s11 = inlined_call_operand.vmem [shape: f32[32,128], index: 11, kind: output, shape index: {}]
  %s12 = sld [smem:[#allocation0]]
  $region54: #{resblock_forward.1} parent=0
    _
  %s14 = ssub.s32 1, %s12
  %s15 = scalar_select 0, %s14, %s12
  // Predicated region
  $region2: #{resblock_forward.1} parent=0 // pred_check
    _
  $region3: #{resblock_forward.1} parent=0 // pred_check_branch
    %17 = sbr.rel (0) target = $region5
  $region4: #{resblock_forward.1} parent=0 // pred_region
    _
  $region5: #{resblock_forward.1} parent=0 // pred_fallthru
    _
  // Predicated region
  $region6: #{resblock_forward.1} parent=0 // pred_check
    _
  $region7: #{resblock_forward.1} parent=0 // pred_check_branch
    %19 = sbr.rel (0) target = $region9
  $region8: #{resblock_forward.1} parent=0 // pred_region
    _
  $region9: #{resblock_forward.1} parent=0 // pred_fallthru
    _
  // Predicated region
  $region10: #{resblock_forward.1} parent=0 // pred_check
    _
  $region11: #{resblock_forward.1} parent=0 // pred_check_branch
    %21 = sbr.rel (0) target = $region13
  $region12: #{resblock_forward.1} parent=0 // pred_region
    _
  $region13: #{resblock_forward.1} parent=0 // pred_fallthru
    _
  // Predicated region
  $region14: #{resblock_forward.1} parent=0 // pred_check
    _
  $region15: #{resblock_forward.1} parent=0 // pred_check_branch
    %23 = sbr.rel (0) target = $region17
  $region16: #{resblock_forward.1} parent=0 // pred_region
    _
  $region17: #{resblock_forward.1} parent=0 // pred_fallthru
    _
  // Predicated region
  $region18: #{resblock_forward.1} parent=0 // pred_check
    _
  $region19: #{resblock_forward.1} parent=0 // pred_check_branch
    %25 = sbr.rel (0) target = $region21
  $region20: #{resblock_forward.1} parent=0 // pred_region
    _
  $region21: #{resblock_forward.1} parent=0 // pred_fallthru
    _
  // Predicated region
  $region22: #{resblock_forward.1} parent=0 // pred_check
    _
  $region23: #{resblock_forward.1} parent=0 // pred_check_branch
    %27 = sbr.rel (0) target = $region25
  $region24: #{resblock_forward.1} parent=0 // pred_region
    _
  $region25: #{resblock_forward.1} parent=0 // pred_fallthru
    _
  // Predicated region
  $region26: #{resblock_forward.1} parent=0 // pred_check
    _
  $region27: #{resblock_forward.1} parent=0 // pred_check_branch
    %29 = sbr.rel (0) target = $region29
  $region28: #{resblock_forward.1} parent=0 // pred_region
    _
  $region29: #{resblock_forward.1} parent=0 // pred_fallthru
    _
  // Predicated region
  $region30: #{resblock_forward.1} parent=0 // pred_check
    _
  $region31: #{resblock_forward.1} parent=0 // pred_check_branch
    %31 = sbr.rel (0) target = $region33
  $region32: #{resblock_forward.1} parent=0 // pred_region
    _
  $region33: #{resblock_forward.1} parent=0 // pred_fallthru
    _
  // Predicated region
  $region34: #{resblock_forward.1} parent=0 // pred_check
    _
  $region35: #{resblock_forward.1} parent=0 // pred_check_branch
    %33 = sbr.rel (0) target = $region37
  $region36: #{resblock_forward.1} parent=0 // pred_region
    _
  $region37: #{resblock_forward.1} parent=0 // pred_fallthru
    _
  // Predicated region
  $region38: #{resblock_forward.1} parent=0 // pred_check
    _
  $region39: #{resblock_forward.1} parent=0 // pred_check_branch
    %35 = sbr.rel (0) target = $region41
  $region40: #{resblock_forward.1} parent=0 // pred_region
    _
  $region41: #{resblock_forward.1} parent=0 // pred_fallthru
    _
  // Predicated region
  $region42: #{resblock_forward.1} parent=0 // pred_check
    _
  $region43: #{resblock_forward.1} parent=0 // pred_check_branch
    %37 = sbr.rel (0) target = $region45
  $region44: #{resblock_forward.1} parent=0 // pred_region
    _
  $region45: #{resblock_forward.1} parent=0 // pred_fallthru
    _
  %v38 = vld [vmem:[%s9] sm:$0xff]
  %v39 = vld [vmem:[%s9 + $0x8] sm:$0xff]
  %v40 = vld [vmem:[%s9 + $0x10] sm:$0xff]
  %v41 = vld [vmem:[%s9 + $0x18] sm:$0xff]
  %v42 = vld [vmem:[%s9 + $0x20] sm:$0xff]
  %v43 = vld [vmem:[%s9 + $0x28] sm:$0xff]
  %v44 = vld [vmem:[%s9 + $0x30] sm:$0xff]
  %v45 = vld [vmem:[%s9 + $0x38] sm:$0xff]
  %v46 = vld [vmem:[%s9 + $0x40] sm:$0xff]
  %v47 = vld [vmem:[%s9 + $0x48] sm:$0xff]
  %v48 = vld [vmem:[%s9 + $0x50] sm:$0xff]
  %v49 = vld [vmem:[%s9 + $0x58] sm:$0xff]
  %v50 = vld [vmem:[%s9 + $0x60] sm:$0xff]
  %v51 = vld [vmem:[%s9 + $0x68] sm:$0xff]
  %v52 = vld [vmem:[%s9 + $0x70] sm:$0xff]
  %v53 = vld [vmem:[%s9 + $0x78] sm:$0xff]
  %v54 = vld [vmem:[%s10] sm:$0xff]
  %v55 = vld [vmem:[%s0] sm:$0xff]
  %v56 = vld [vmem:[%s0 + $0x8] sm:$0xff]
  %v57 = vld [vmem:[%s0 + $0x10] sm:$0xff]
  %v58 = vld [vmem:[%s0 + $0x18] sm:$0xff]
  %v59 = vlaneseq
  %v60 = vshrl.u32 %v59, 7
  %v61 = vadd.s32 %v60, 8
  %v62 = vadd.s32 %v60, 16
  %v63 = vadd.s32 %v60, 24
  %vm64 = vcmp.lt.s32.totalorder %v60, 0
  %v65 = vsub.s32 0, %v60
  %v66 = vsel %vm64, %v65, %v60
  %v67 = vshrl.u32 %v66, 4
  %v68 = vand.u32 %v66, 15
  %v69 = vsub.s32 0, %v68
  %v70 = vsel %vm64, %v69, %v68
  %vm71 = vcmp.lt.s32.totalorder %v61, 0
  %v72 = vsub.s32 0, %v61
  %v73 = vsel %vm71, %v72, %v61
  %v74 = vshrl.u32 %v73, 4
  %v75 = vand.u32 %v73, 15
  %v76 = vsub.s32 0, %v75
  %v77 = vsel %vm71, %v76, %v75
  %vm78 = vcmp.lt.s32.totalorder %v62, 0
  %v79 = vsub.s32 0, %v62
  %v80 = vsel %vm78, %v79, %v62
  %v81 = vshrl.u32 %v80, 4
  %v82 = vand.u32 %v80, 15
  %v83 = vsub.s32 0, %v82
  %v84 = vsel %vm78, %v83, %v82
  %vm85 = vcmp.lt.s32.totalorder %v63, 0
  %v86 = vsub.s32 0, %v63
  %v87 = vsel %vm85, %v86, %v63
  %v88 = vshrl.u32 %v87, 4
  %v89 = vand.u32 %v87, 15
  %v90 = vsub.s32 0, %v89
  %v91 = vsel %vm85, %v90, %v89
  %vm92 = vcmp.ne.s32.totalorder %v70, 0
  %vm93 = vcmp.ne.s32.totalorder %v77, 0
  %vm94 = vcmp.ne.s32.totalorder %v84, 0
  %vm95 = vcmp.ne.s32.totalorder %v91, 0
  %vm96 = vcmp.lt.s32.totalorder %v70, 0
  %vm97 = vcmp.lt.s32.totalorder %v77, 0
  %vm98 = vcmp.lt.s32.totalorder %v84, 0
  %vm99 = vcmp.lt.s32.totalorder %v91, 0
  %vm100 = vmand %vm96, %vm92
  %vm101 = vmand %vm97, %vm93
  %vm102 = vmand %vm98, %vm94
  %vm103 = vmand %vm99, %vm95
  %v104 = vadd.s32 %v70, 16
  %v105 = vadd.s32 %v77, 16
  %v106 = vadd.s32 %v84, 16
  %v107 = vadd.s32 %v91, 16
  %v108 = vsel %vm100, %v104, %v70
  %v109 = vsel %vm101, %v105, %v77
  %v110 = vsel %vm102, %v106, %v84
  %v111 = vsel %vm103, %v107, %v91
  %vm112 = vcmp.eq.s32.totalorder %v108, 0
  %vm113 = vcmp.eq.s32.totalorder %v109, 0
  %vm114 = vcmp.eq.s32.totalorder %v110, 0
  %vm115 = vcmp.eq.s32.totalorder %v111, 0
  %vm116 = vcmp.eq.s32.totalorder %v108, 15
  %vm117 = vcmp.eq.s32.totalorder %v109, 15
  %vm118 = vcmp.eq.s32.totalorder %v110, 15
  %vm119 = vcmp.eq.s32.totalorder %v111, 15
  %v120 = vrot.slane %v55, 7
  %v121 = vrot.slane %v56, 7
  %v122 = vrot.slane %v57, 7
  %v123 = vrot.slane %v58, 7
  %vm124 = vcmp.lt.s32.totalorder %v60, 1
  %v125 = vsel %vm124, %v122, %v123
  %v126 = vsel %vm124, %v121, %v122
  %v127 = vsel %vm124, %v120, %v121
  %v128 = vsel %vm124, %v123, %v120
  %v129 = vsel %vm112, 1, 0
  %v130 = vsel %vm113, 1, 0
  %v131 = vsel %vm114, 1, 0
  %v132 = vsel %vm115, 1, 0
  %vm133 = vcmp.eq.s32.totalorder %v129, 1
  %vm134 = vcmp.eq.s32.totalorder %v130, 1
  %vm135 = vcmp.eq.s32.totalorder %v131, 1
  %vm136 = vcmp.eq.s32.totalorder %v132, 1
  %v137 = vsel %vm133, 0.0, %v128
  %v138 = vsel %vm134, 0.0, %v127
  %v139 = vsel %vm135, 0.0, %v126
  %v140 = vsel %vm136, 0.0, %v125
  %v141 = vrot.slane %v55, 1
  %v142 = vrot.slane %v56, 1
  %v143 = vrot.slane %v57, 1
  %v144 = vrot.slane %v58, 1
  %vm145 = vcmp.lt.s32.totalorder %v60, 7
  %v146 = vsel %vm145, %v143, %v144
  %v147 = vsel %vm145, %v142, %v143
  %v148 = vsel %vm145, %v141, %v142
  %v149 = vsel %vm145, %v144, %v141
  %v150 = vsel %vm116, 1, 0
  %v151 = vsel %vm117, 1, 0
  %v152 = vsel %vm118, 1, 0
  %v153 = vsel %vm119, 1, 0
  %vm154 = vcmp.eq.s32.totalorder %v150, 1
  %vm155 = vcmp.eq.s32.totalorder %v151, 1
  %vm156 = vcmp.eq.s32.totalorder %v152, 1
  %vm157 = vcmp.eq.s32.totalorder %v153, 1
  %v158 = vsel %vm154, 0.0, %v148
  %v159 = vsel %vm155, 0.0, %v147
  %v160 = vsel %vm156, 0.0, %v146
  %v161 = vsel %vm157, 0.0, %v149
  %166 = vrot.lane.b32.xlu0 %v55, 64
  %v167 = vpop.permute.xlu0 %166
  %168 = vrot.lane.b32.xlu0 %v56, 64
  %v169 = vpop.permute.xlu0 %168
  %170 = vrot.lane.b32.xlu0 %v57, 64
  %v171 = vpop.permute.xlu0 %170
  %172 = vrot.lane.b32.xlu0 %v58, 64
  %v173 = vpop.permute.xlu0 %172
  %vm178 = vcmask 523264
  %v179 = vsel %vm178, %v137, %v167
  %v180 = vsel %vm178, %v138, %v169
  %v181 = vsel %vm178, %v139, %v171
  %v182 = vsel %vm178, %v140, %v173
  %v183 = vld [vmem:[%s1] sm:$0xff]
  %v184 = vld [vmem:[%s1 + $0x8] sm:$0xff]
  %v185 = vld [vmem:[%s1 + $0x10] sm:$0xff]
  %v186 = vld [vmem:[%s1 + $0x18] sm:$0xff]
  %v187 = vld [vmem:[%s1 + $0x20] sm:$0xff]
  %v188 = vld [vmem:[%s1 + $0x28] sm:$0xff]
  %v189 = vld [vmem:[%s1 + $0x30] sm:$0xff]
  %v190 = vld [vmem:[%s1 + $0x38] sm:$0xff]
  %v191 = vld [vmem:[%s1 + $0x40] sm:$0xff]
  %v192 = vld [vmem:[%s1 + $0x48] sm:$0xff]
  %v193 = vld [vmem:[%s1 + $0x50] sm:$0xff]
  %v194 = vld [vmem:[%s1 + $0x58] sm:$0xff]
  %v195 = vld [vmem:[%s1 + $0x60] sm:$0xff]
  %v196 = vld [vmem:[%s1 + $0x68] sm:$0xff]
  %v197 = vld [vmem:[%s1 + $0x70] sm:$0xff]
  %v198 = vld [vmem:[%s1 + $0x78] sm:$0xff]
  %v199 = vld [vmem:[%s1 + $0x80] sm:$0xff]
  %v200 = vld [vmem:[%s1 + $0x88] sm:$0xff]
  %v201 = vld [vmem:[%s1 + $0x90] sm:$0xff]
  %v202 = vld [vmem:[%s1 + $0x98] sm:$0xff]
  %v203 = vld [vmem:[%s1 + $0xa0] sm:$0xff]
  %v204 = vld [vmem:[%s1 + $0xa8] sm:$0xff]
  %v205 = vld [vmem:[%s1 + $0xb0] sm:$0xff]
  %v206 = vld [vmem:[%s1 + $0xb8] sm:$0xff]
  %v207 = vld [vmem:[%s1 + $0xc0] sm:$0xff]
  %v208 = vld [vmem:[%s1 + $0xc8] sm:$0xff]
  %v209 = vld [vmem:[%s1 + $0xd0] sm:$0xff]
  %v210 = vld [vmem:[%s1 + $0xd8] sm:$0xff]
  %v211 = vld [vmem:[%s1 + $0xe0] sm:$0xff]
  %v212 = vld [vmem:[%s1 + $0xe8] sm:$0xff]
  %v213 = vld [vmem:[%s1 + $0xf0] sm:$0xff]
  %v214 = vld [vmem:[%s1 + $0xf8] sm:$0xff]
  %v215 = vld [vmem:[%s1 + $0x100] sm:$0xff]
  %v216 = vld [vmem:[%s1 + $0x108] sm:$0xff]
  %v217 = vld [vmem:[%s1 + $0x110] sm:$0xff]
  %v218 = vld [vmem:[%s1 + $0x118] sm:$0xff]
  %v219 = vld [vmem:[%s1 + $0x120] sm:$0xff]
  %v220 = vld [vmem:[%s1 + $0x128] sm:$0xff]
  %v221 = vld [vmem:[%s1 + $0x130] sm:$0xff]
  %v222 = vld [vmem:[%s1 + $0x138] sm:$0xff]
  %v223 = vld [vmem:[%s1 + $0x140] sm:$0xff]
  %v224 = vld [vmem:[%s1 + $0x148] sm:$0xff]
  %v225 = vld [vmem:[%s1 + $0x150] sm:$0xff]
  %v226 = vld [vmem:[%s1 + $0x158] sm:$0xff]
  %v227 = vld [vmem:[%s1 + $0x160] sm:$0xff]
  %v228 = vld [vmem:[%s1 + $0x168] sm:$0xff]
  %v229 = vld [vmem:[%s1 + $0x170] sm:$0xff]
  %v230 = vld [vmem:[%s1 + $0x178] sm:$0xff]
  %v232 = vsel %vm178, %v158, 0
  %v235 = vsel %vm178, %v159, 0
  %v238 = vsel %vm178, %v160, 0
  %v241 = vsel %vm178, %v161, 0
  %243 = vmatprep.subr.mxu0 %v184
  %244 = vmatpush1.msra.mxu0 %v183
  %245 = vmatprep.subr.mxu0 %v186
  %246 = vmatpush1.msra.mxu0 %v185
  %247 = vmatprep.subr.mxu0 %v188
  %248 = vmatpush1.msra.mxu0 %v187
  %249 = vmatprep.subr.mxu0 %v190
  %250 = vmatpush1.msra.mxu0 %v189
  %251 = vmatprep.subr.mxu0 %v192
  %252 = vmatpush1.msra.mxu0 %v191
  %253 = vmatprep.subr.mxu0 %v194
  %254 = vmatpush1.msra.mxu0 %v193
  %255 = vmatprep.subr.mxu0 %v196
  %256 = vmatpush1.msra.mxu0 %v195
  %257 = vmatprep.subr.mxu0 %v198
  %258 = vmatpush1.msra.mxu0 %v197
  %259 = vmatprep.subr.mxu0 %v200
  %260 = vmatpush1.msra.mxu0 %v199
  %261 = vmatprep.subr.mxu0 %v202
  %262 = vmatpush1.msra.mxu0 %v201
  %263 = vmatprep.subr.mxu0 %v204
  %264 = vmatpush1.msra.mxu0 %v203
  %265 = vmatprep.subr.mxu0 %v206
  %266 = vmatpush1.msra.mxu0 %v205
  %267 = vmatprep.subr.mxu0 %v208
  %268 = vmatpush1.msra.mxu0 %v207
  %269 = vmatprep.subr.mxu0 %v210
  %270 = vmatpush1.msra.mxu0 %v209
  %271 = vmatprep.subr.mxu0 %v212
  %272 = vmatpush1.msra.mxu0 %v211
  %273 = vmatprep.subr.mxu0 %v214
  %274 = vmatpush1.msra.mxu0 %v213
  %275 = vmatprep.subr.mxu0 %v216
  %276 = vmatpush1.msra.mxu0 %v215
  %277 = vmatprep.subr.mxu0 %v218
  %278 = vmatpush1.msra.mxu0 %v217
  %279 = vmatprep.subr.mxu0 %v220
  %280 = vmatpush1.msra.mxu0 %v219
  %281 = vmatprep.subr.mxu0 %v222
  %282 = vmatpush1.msra.mxu0 %v221
  %283 = vmatprep.subr.mxu0 %v224
  %284 = vmatpush1.msra.mxu0 %v223
  %285 = vmatprep.subr.mxu0 %v226
  %286 = vmatpush1.msra.mxu0 %v225
  %287 = vmatprep.subr.mxu0 %v228
  %288 = vmatpush1.msra.mxu0 %v227
  %289 = vmatprep.subr.mxu0 %v230
  %290 = vmatpush1.msra.mxu0 %v229
  %291 = vmatprep.subr.mxu0 0.0
  %292 = vmatpush1.msra.mxu0 0.0
  %293 = vmatprep.subr.mxu0 0.0
  %294 = vmatpush1.msra.mxu0 0.0
  %295 = vmatprep.subr.mxu0 0.0
  %296 = vmatpush1.msra.mxu0 0.0
  %297 = vmatprep.subr.mxu0 0.0
  %298 = vmatpush1.msra.mxu0 0.0
  %299 = vmatprep.subr.mxu0 0.0
  %300 = vmatpush1.msra.mxu0 0.0
  %301 = vmatprep.subr.mxu0 0.0
  %302 = vmatpush1.msra.mxu0 0.0
  %303 = vmatprep.subr.mxu0 0.0
  %304 = vmatpush1.msra.mxu0 0.0
  %305 = vmatprep.subr.mxu0 0.0
  %306 = vmatpush1.msra.mxu0 0.0
  %307 = vmatprep.mubr.f32.mxu0 %v232
  %308 = vmatmul.mubr.f32.gmra.mrb[0].mxu0 %v179
  %v309 = vpop.f32.mrb[0].mxu0
  %v310 = vadd.f32 0.0, %v309
  %v311 = vpop.f32.mrb[0].mxu0
  %v312 = vadd.f32 0.0, %v311
  %313 = vmatprep.mubr.f32.mxu0 %v235
  %314 = vmatmul.mubr.f32.gmra.mrb[0].mxu0 %v180
  %v315 = vpop.f32.mrb[0].mxu0
  %v316 = vadd.f32 0.0, %v315
  %v317 = vpop.f32.mrb[0].mxu0
  %v318 = vadd.f32 0.0, %v317
  %319 = vmatprep.mubr.f32.mxu0 %v238
  %320 = vmatmul.mubr.f32.gmra.mrb[0].mxu0 %v181
  %v321 = vpop.f32.mrb[0].mxu0
  %v322 = vadd.f32 0.0, %v321
  %v323 = vpop.f32.mrb[0].mxu0
  %v324 = vadd.f32 0.0, %v323
  %325 = vmatprep.mubr.f32.mxu0 %v241
  %326 = vmatmul.mubr.f32.gmra.mrb[0].mxu0 %v182
  %v327 = vpop.f32.mrb[0].mxu0
  %v328 = vadd.f32 0.0, %v327
  %v329 = vpop.f32.mrb[0].mxu0
  %v330 = vadd.f32 0.0, %v329
  %331 = vdwg.mxu0
  %v332 = vld [vmem:[%s3] sm:$0x1]
  %v333 = vld [vmem:[%s4] sm:$0x1]
  %v334 = vadd.f32 %v310, %v316
  %v335 = vadd.f32 %v334, %v322
  %v336 = vadd.f32 %v335, %v328
  %v337 = vrot.slane %v336, 4
  %v338 = vadd.f32 %v336, %v337
  %v339 = vrot.slane %v338, 2
  %v340 = vadd.f32 %v338, %v339
  %v341 = vrot.slane %v340, 1
  %v342 = vadd.f32 %v340, %v341
  %v343 = vmul.f32 %v310, %v310
  %v344 = vmul.f32 %v316, %v316
  %v345 = vmul.f32 %v322, %v322
  %v346 = vmul.f32 %v328, %v328
  %v347 = vadd.f32 %v343, %v344
  %v348 = vadd.f32 %v347, %v345
  %v349 = vadd.f32 %v348, %v346
  %v350 = vrot.slane %v349, 4
  %v351 = vadd.f32 %v349, %v350
  %v352 = vrot.slane %v351, 2
  %v353 = vadd.f32 %v351, %v352
  %v354 = vrot.slane %v353, 1
  %v355 = vadd.f32 %v353, %v354
  %vm356 = vcmask 1040384
  %v357 = vsel %vm356, %v342, %v355
  %358 = vmatprep.subr.mxu0 0.0
  %359 = vmatpush1.msra.mxu0 %v38
  %360 = vmatprep.subr.mxu0 0.0
  %361 = vmatpush1.msra.mxu0 %v39
  %362 = vmatprep.subr.mxu0 0.0
  %363 = vmatpush1.msra.mxu0 %v40
  %364 = vmatprep.subr.mxu0 0.0
  %365 = vmatpush1.msra.mxu0 %v41
  %366 = vmatprep.subr.mxu0 0.0
  %367 = vmatpush1.msra.mxu0 %v42
  %368 = vmatprep.subr.mxu0 0.0
  %369 = vmatpush1.msra.mxu0 %v43
  %370 = vmatprep.subr.mxu0 0.0
  %371 = vmatpush1.msra.mxu0 %v44
  %372 = vmatprep.subr.mxu0 0.0
  %373 = vmatpush1.msra.mxu0 %v45
  %374 = vmatprep.subr.mxu0 0.0
  %375 = vmatpush1.msra.mxu0 %v46
  %376 = vmatprep.subr.mxu0 0.0
  %377 = vmatpush1.msra.mxu0 %v47
  %378 = vmatprep.subr.mxu0 0.0
  %379 = vmatpush1.msra.mxu0 %v48
  %380 = vmatprep.subr.mxu0 0.0
  %381 = vmatpush1.msra.mxu0 %v49
  %382 = vmatprep.subr.mxu0 0.0
  %383 = vmatpush1.msra.mxu0 %v50
  %384 = vmatprep.subr.mxu0 0.0
  %385 = vmatpush1.msra.mxu0 %v51
  %386 = vmatprep.subr.mxu0 0.0
  %387 = vmatpush1.msra.mxu0 %v52
  %388 = vmatprep.subr.mxu0 0.0
  %389 = vmatpush1.msra.mxu0 %v53
  %390 = vmatprep.subr.mxu0 0.0
  %391 = vmatpush1.msra.mxu0 0.0
  %392 = vmatprep.subr.mxu0 0.0
  %393 = vmatpush1.msra.mxu0 0.0
  %394 = vmatprep.subr.mxu0 0.0
  %395 = vmatpush1.msra.mxu0 0.0
  %396 = vmatprep.subr.mxu0 0.0
  %397 = vmatpush1.msra.mxu0 0.0
  %398 = vmatprep.subr.mxu0 0.0
  %399 = vmatpush1.msra.mxu0 0.0
  %400 = vmatprep.subr.mxu0 0.0
  %401 = vmatpush1.msra.mxu0 0.0
  %402 = vmatprep.subr.mxu0 0.0
  %403 = vmatpush1.msra.mxu0 0.0
  %404 = vmatprep.subr.mxu0 0.0
  %405 = vmatpush1.msra.mxu0 0.0
  %406 = vmatprep.subr.mxu0 0.0
  %407 = vmatpush1.msra.mxu0 0.0
  %408 = vmatprep.subr.mxu0 0.0
  %409 = vmatpush1.msra.mxu0 0.0
  %410 = vmatprep.subr.mxu0 0.0
  %411 = vmatpush1.msra.mxu0 0.0
  %412 = vmatprep.subr.mxu0 0.0
  %413 = vmatpush1.msra.mxu0 0.0
  %414 = vmatprep.subr.mxu0 0.0
  %415 = vmatpush1.msra.mxu0 0.0
  %416 = vmatprep.subr.mxu0 0.0
  %417 = vmatpush1.msra.mxu0 0.0
  %418 = vmatprep.subr.mxu0 0.0
  %419 = vmatpush1.msra.mxu0 0.0
  %420 = vmatprep.subr.mxu0 0.0
  %421 = vmatpush1.msra.mxu0 0.0
  %422 = vmatprep.mubr.f32.mxu0 0.0
  %423 = vmatmul.mubr.f32.gmra.mrb[0].mxu0 %v357
  %v424 = vpop.f32.mrb[0].mxu0
  %v425 = vadd.f32 0.0, %v424
  %v426 = vpop.f32.mrb[0].mxu0
  %427 = vdwg.mxu0
  %v428 = vmul.f32 %v425, 0.001953125
  %v429 = vmul.f32 %v428, %v428
  %v431 = vrot.slane %v429, 7
  %v433 = vsub.f32 %v428, %v431
  %v434 = vadd.f32 %v433, 1e-05
  %v435 = vrsqrt.pop %v434
  %v438 = vunpack.c.l.s4 1966171168
  %v439 = vunpack.c.0.s8 %v438
  %v440 = vlaneseq
  %v441 = vshrl.u32 %v440, 7
  %v442 = vsub.s32 %v439, %v441
  %v443 = vrot.slane %v435, %v442
  %v444 = vcombine.high %v443, %v443
  %v446 = vunpack.c.l.s4 1966171168
  %v447 = vunpack.c.0.s8 %v446
  %v448 = vlaneseq
  %v449 = vshrl.u32 %v448, 7
  %v450 = vsub.s32 %v447, %v449
  %v451 = vrot.slane %v444, %v450
  %v453 = vmul.f32 %v332, %v451
  %v454 = vmul.f32 %v428, %v453
  %v455 = vsub.f32 %v333, %v454
  %v457 = vlaneseq
  %v458 = vshrl.u32 %v457, 7
  %v459 = vsub.s32 0, %v458
  %v460 = vrot.slane %v455, %v459
  %v462 = vsel %vm356, %v453, %v460
  %vm463 = vcmask 64512
  %v465 = vsel %vm463, %v462, 0
  %467 = vmatprep.subr.mxu0 0.0
  %468 = vmatpush1.msra.mxu0 %v54
  %469 = vmatprep.subr.mxu0 0.0
  %470 = vmatpush1.msra.mxu0 0.0
  %471 = vmatprep.subr.mxu0 0.0
  %472 = vmatpush1.msra.mxu0 0.0
  %473 = vmatprep.subr.mxu0 0.0
  %474 = vmatpush1.msra.mxu0 0.0
  %475 = vmatprep.subr.mxu0 0.0
  %476 = vmatpush1.msra.mxu0 0.0
  %477 = vmatprep.subr.mxu0 0.0
  %478 = vmatpush1.msra.mxu0 0.0
  %479 = vmatprep.subr.mxu0 0.0
  %480 = vmatpush1.msra.mxu0 0.0
  %481 = vmatprep.subr.mxu0 0.0
  %482 = vmatpush1.msra.mxu0 0.0
  %483 = vmatprep.subr.mxu0 0.0
  %484 = vmatpush1.msra.mxu0 0.0
  %485 = vmatprep.subr.mxu0 0.0
  %486 = vmatpush1.msra.mxu0 0.0
  %487 = vmatprep.subr.mxu0 0.0
  %488 = vmatpush1.msra.mxu0 0.0
  %489 = vmatprep.subr.mxu0 0.0
  %490 = vmatpush1.msra.mxu0 0.0
  %491 = vmatprep.subr.mxu0 0.0
  %492 = vmatpush1.msra.mxu0 0.0
  %493 = vmatprep.subr.mxu0 0.0
  %494 = vmatpush1.msra.mxu0 0.0
  %495 = vmatprep.subr.mxu0 0.0
  %496 = vmatpush1.msra.mxu0 0.0
  %497 = vmatprep.subr.mxu0 0.0
  %498 = vmatpush1.msra.mxu0 0.0
  %499 = vmatprep.subr.mxu0 0.0
  %500 = vmatpush1.msra.mxu0 0.0
  %501 = vmatprep.subr.mxu0 0.0
  %502 = vmatpush1.msra.mxu0 0.0
  %503 = vmatprep.subr.mxu0 0.0
  %504 = vmatpush1.msra.mxu0 0.0
  %505 = vmatprep.subr.mxu0 0.0
  %506 = vmatpush1.msra.mxu0 0.0
  %507 = vmatprep.subr.mxu0 0.0
  %508 = vmatpush1.msra.mxu0 0.0
  %509 = vmatprep.subr.mxu0 0.0
  %510 = vmatpush1.msra.mxu0 0.0
  %511 = vmatprep.subr.mxu0 0.0
  %512 = vmatpush1.msra.mxu0 0.0
  %513 = vmatprep.subr.mxu0 0.0
  %514 = vmatpush1.msra.mxu0 0.0
  %515 = vmatprep.subr.mxu0 0.0
  %516 = vmatpush1.msra.mxu0 0.0
  %517 = vmatprep.subr.mxu0 0.0
  %518 = vmatpush1.msra.mxu0 0.0
  %519 = vmatprep.subr.mxu0 0.0
  %520 = vmatpush1.msra.mxu0 0.0
  %521 = vmatprep.subr.mxu0 0.0
  %522 = vmatpush1.msra.mxu0 0.0
  %523 = vmatprep.subr.mxu0 0.0
  %524 = vmatpush1.msra.mxu0 0.0
  %525 = vmatprep.subr.mxu0 0.0
  %526 = vmatpush1.msra.mxu0 0.0
  %527 = vmatprep.subr.mxu0 0.0
  %528 = vmatpush1.msra.mxu0 0.0
  %529 = vmatprep.subr.mxu0 0.0
  %530 = vmatpush1.msra.mxu0 0.0
  %531 = vmatprep.mubr.f32.mxu0 0.0
  %532 = vmatmul.mubr.f32.gmra.mrb[0].mxu0 %v465
  %v533 = vpop.f32.mrb[0].mxu0
  %v534 = vadd.f32 0.0, %v533
  %v535 = vpop.f32.mrb[0].mxu0
  %536 = vdwg.mxu0
  %v537 = vlaneseq
  %v538 = vshrl.u32 %v537, 7
  %v539 = vsub.s32 0, %v538
  %v540 = vrot.slane %v534, %v539
  %v541 = vmul.f32 %v310, %v540
  %v542 = vmul.f32 %v316, %v540
  %v543 = vmul.f32 %v322, %v540
  %v544 = vmul.f32 %v328, %v540
  %v545 = vlaneseq
  %v546 = vshrl.u32 %v545, 7
  %v547 = vsub.s32 1, %v546
  %v548 = vrot.slane %v534, %v547
  %v549 = vadd.f32 %v541, %v548
  %v550 = vadd.f32 %v542, %v548
  %v551 = vadd.f32 %v543, %v548
  %v552 = vadd.f32 %v544, %v548
  %v553 = vmax.f32 %v549, 0.0
  %v554 = vmax.f32 %v550, 0.0
  %v555 = vmax.f32 %v551, 0.0
  %v556 = vmax.f32 %v552, 0.0
  %v557 = vrot.slane %v553, 7
  %v558 = vrot.slane %v554, 7
  %v559 = vrot.slane %v555, 7
  %v560 = vrot.slane %v556, 7
  %v561 = vsel %vm124, %v559, %v560
  %v562 = vsel %vm124, %v558, %v559
  %v563 = vsel %vm124, %v557, %v558
  %v564 = vsel %vm124, %v560, %v557
  %v565 = vsel %vm133, 0.0, %v564
  %v566 = vsel %vm134, 0.0, %v563
  %v567 = vsel %vm135, 0.0, %v562
  %v568 = vsel %vm136, 0.0, %v561
  %v569 = vrot.slane %v553, 1
  %v570 = vrot.slane %v554, 1
  %v571 = vrot.slane %v555, 1
  %v572 = vrot.slane %v556, 1
  %v573 = vsel %vm145, %v571, %v572
  %v574 = vsel %vm145, %v570, %v571
  %v575 = vsel %vm145, %v569, %v570
  %v576 = vsel %vm145, %v572, %v569
  %v577 = vsel %vm154, 0.0, %v575
  %v578 = vsel %vm155, 0.0, %v574
  %v579 = vsel %vm156, 0.0, %v573
  %v580 = vsel %vm157, 0.0, %v576
  %v581 = vld [vmem:[%s2] sm:$0xff]
  %v582 = vld [vmem:[%s2 + $0x8] sm:$0xff]
  %v583 = vld [vmem:[%s2 + $0x10] sm:$0xff]
  %v584 = vld [vmem:[%s2 + $0x18] sm:$0xff]
  %v585 = vld [vmem:[%s2 + $0x20] sm:$0xff]
  %v586 = vld [vmem:[%s2 + $0x28] sm:$0xff]
  %v587 = vld [vmem:[%s2 + $0x30] sm:$0xff]
  %v588 = vld [vmem:[%s2 + $0x38] sm:$0xff]
  %v589 = vld [vmem:[%s2 + $0x40] sm:$0xff]
  %v590 = vld [vmem:[%s2 + $0x48] sm:$0xff]
  %v591 = vld [vmem:[%s2 + $0x50] sm:$0xff]
  %v592 = vld [vmem:[%s2 + $0x58] sm:$0xff]
  %v593 = vld [vmem:[%s2 + $0x60] sm:$0xff]
  %v594 = vld [vmem:[%s2 + $0x68] sm:$0xff]
  %v595 = vld [vmem:[%s2 + $0x70] sm:$0xff]
  %v596 = vld [vmem:[%s2 + $0x78] sm:$0xff]
  %v597 = vld [vmem:[%s2 + $0x80] sm:$0xff]
  %v598 = vld [vmem:[%s2 + $0x88] sm:$0xff]
  %v599 = vld [vmem:[%s2 + $0x90] sm:$0xff]
  %v600 = vld [vmem:[%s2 + $0x98] sm:$0xff]
  %v601 = vld [vmem:[%s2 + $0xa0] sm:$0xff]
  %v602 = vld [vmem:[%s2 + $0xa8] sm:$0xff]
  %v603 = vld [vmem:[%s2 + $0xb0] sm:$0xff]
  %v604 = vld [vmem:[%s2 + $0xb8] sm:$0xff]
  %v605 = vld [vmem:[%s2 + $0xc0] sm:$0xff]
  %v606 = vld [vmem:[%s2 + $0xc8] sm:$0xff]
  %v607 = vld [vmem:[%s2 + $0xd0] sm:$0xff]
  %v608 = vld [vmem:[%s2 + $0xd8] sm:$0xff]
  %v609 = vld [vmem:[%s2 + $0xe0] sm:$0xff]
  %v610 = vld [vmem:[%s2 + $0xe8] sm:$0xff]
  %v611 = vld [vmem:[%s2 + $0xf0] sm:$0xff]
  %v612 = vld [vmem:[%s2 + $0xf8] sm:$0xff]
  %v613 = vld [vmem:[%s2 + $0x100] sm:$0xff]
  %v614 = vld [vmem:[%s2 + $0x108] sm:$0xff]
  %v615 = vld [vmem:[%s2 + $0x110] sm:$0xff]
  %v616 = vld [vmem:[%s2 + $0x118] sm:$0xff]
  %v617 = vld [vmem:[%s2 + $0x120] sm:$0xff]
  %v618 = vld [vmem:[%s2 + $0x128] sm:$0xff]
  %v619 = vld [vmem:[%s2 + $0x130] sm:$0xff]
  %v620 = vld [vmem:[%s2 + $0x138] sm:$0xff]
  %v621 = vld [vmem:[%s2 + $0x140] sm:$0xff]
  %v622 = vld [vmem:[%s2 + $0x148] sm:$0xff]
  %v623 = vld [vmem:[%s2 + $0x150] sm:$0xff]
  %v624 = vld [vmem:[%s2 + $0x158] sm:$0xff]
  %v625 = vld [vmem:[%s2 + $0x160] sm:$0xff]
  %v626 = vld [vmem:[%s2 + $0x168] sm:$0xff]
  %v627 = vld [vmem:[%s2 + $0x170] sm:$0xff]
  %v628 = vld [vmem:[%s2 + $0x178] sm:$0xff]
  %629 = vmatprep.subr.mxu0 0.0
  %630 = vmatpush1.msra.mxu0 %v581
  %631 = vmatprep.subr.mxu0 0.0
  %632 = vmatpush1.msra.mxu0 %v582
  %633 = vmatprep.subr.mxu0 0.0
  %634 = vmatpush1.msra.mxu0 %v583
  %635 = vmatprep.subr.mxu0 0.0
  %636 = vmatpush1.msra.mxu0 %v584
  %637 = vmatprep.subr.mxu0 0.0
  %638 = vmatpush1.msra.mxu0 %v585
  %639 = vmatprep.subr.mxu0 0.0
  %640 = vmatpush1.msra.mxu0 %v586
  %641 = vmatprep.subr.mxu0 0.0
  %642 = vmatpush1.msra.mxu0 %v587
  %643 = vmatprep.subr.mxu0 0.0
  %644 = vmatpush1.msra.mxu0 %v588
  %645 = vmatprep.subr.mxu0 0.0
  %646 = vmatpush1.msra.mxu0 %v589
  %647 = vmatprep.subr.mxu0 0.0
  %648 = vmatpush1.msra.mxu0 %v590
  %649 = vmatprep.subr.mxu0 0.0
  %650 = vmatpush1.msra.mxu0 %v591
  %651 = vmatprep.subr.mxu0 0.0
  %652 = vmatpush1.msra.mxu0 %v592
  %653 = vmatprep.subr.mxu0 0.0
  %654 = vmatpush1.msra.mxu0 %v593
  %655 = vmatprep.subr.mxu0 0.0
  %656 = vmatpush1.msra.mxu0 %v594
  %657 = vmatprep.subr.mxu0 0.0
  %658 = vmatpush1.msra.mxu0 %v595
  %659 = vmatprep.subr.mxu0 0.0
  %660 = vmatpush1.msra.mxu0 %v596
  %661 = vmatprep.subr.mxu0 0.0
  %662 = vmatpush1.msra.mxu0 %v597
  %663 = vmatprep.subr.mxu0 0.0
  %664 = vmatpush1.msra.mxu0 %v598
  %665 = vmatprep.subr.mxu0 0.0
  %666 = vmatpush1.msra.mxu0 %v599
  %667 = vmatprep.subr.mxu0 0.0
  %668 = vmatpush1.msra.mxu0 %v600
  %669 = vmatprep.subr.mxu0 0.0
  %670 = vmatpush1.msra.mxu0 %v601
  %671 = vmatprep.subr.mxu0 0.0
  %672 = vmatpush1.msra.mxu0 %v602
  %673 = vmatprep.subr.mxu0 0.0
  %674 = vmatpush1.msra.mxu0 %v603
  %675 = vmatprep.subr.mxu0 0.0
  %676 = vmatpush1.msra.mxu0 %v604
  %677 = vmatprep.subr.mxu0 0.0
  %678 = vmatpush1.msra.mxu0 %v605
  %679 = vmatprep.subr.mxu0 0.0
  %680 = vmatpush1.msra.mxu0 %v606
  %681 = vmatprep.subr.mxu0 0.0
  %682 = vmatpush1.msra.mxu0 %v607
  %683 = vmatprep.subr.mxu0 0.0
  %684 = vmatpush1.msra.mxu0 %v608
  %685 = vmatprep.subr.mxu0 0.0
  %686 = vmatpush1.msra.mxu0 %v609
  %687 = vmatprep.subr.mxu0 0.0
  %688 = vmatpush1.msra.mxu0 %v610
  %689 = vmatprep.subr.mxu0 0.0
  %690 = vmatpush1.msra.mxu0 %v611
  %691 = vmatprep.subr.mxu0 0.0
  %692 = vmatpush1.msra.mxu0 %v612
  %693 = vmatprep.mubr.f32.mxu0 %v553
  %694 = vmatmul.mubr.f32.gmra.mrb[0].mxu0 %v565
  %v695 = vpop.f32.mrb[0].mxu0
  %v696 = vadd.f32 0.0, %v695
  %v697 = vpop.f32.mrb[0].mxu0
  %698 = vmatprep.mubr.f32.mxu0 %v554
  %699 = vmatmul.mubr.f32.gmra.mrb[0].mxu0 %v566
  %v700 = vpop.f32.mrb[0].mxu0
  %v701 = vadd.f32 0.0, %v700
  %v702 = vpop.f32.mrb[0].mxu0
  %703 = vmatprep.mubr.f32.mxu0 %v555
  %704 = vmatmul.mubr.f32.gmra.mrb[0].mxu0 %v567
  %v705 = vpop.f32.mrb[0].mxu0
  %v706 = vadd.f32 0.0, %v705
  %v707 = vpop.f32.mrb[0].mxu0
  %708 = vmatprep.mubr.f32.mxu0 %v556
  %709 = vmatmul.mubr.f32.gmra.mrb[0].mxu0 %v568
  %v710 = vpop.f32.mrb[0].mxu0
  %v711 = vadd.f32 0.0, %v710
  %v712 = vpop.f32.mrb[0].mxu0
  %713 = vdwg.mxu0
  %714 = vmatprep.subr.mxu0 0.0
  %715 = vmatpush1.msra.mxu0 %v613
  %716 = vmatprep.subr.mxu0 0.0
  %717 = vmatpush1.msra.mxu0 %v614
  %718 = vmatprep.subr.mxu0 0.0
  %719 = vmatpush1.msra.mxu0 %v615
  %720 = vmatprep.subr.mxu0 0.0
  %721 = vmatpush1.msra.mxu0 %v616
  %722 = vmatprep.subr.mxu0 0.0
  %723 = vmatpush1.msra.mxu0 %v617
  %724 = vmatprep.subr.mxu0 0.0
  %725 = vmatpush1.msra.mxu0 %v618
  %726 = vmatprep.subr.mxu0 0.0
  %727 = vmatpush1.msra.mxu0 %v619
  %728 = vmatprep.subr.mxu0 0.0
  %729 = vmatpush1.msra.mxu0 %v620
  %730 = vmatprep.subr.mxu0 0.0
  %731 = vmatpush1.msra.mxu0 %v621
  %732 = vmatprep.subr.mxu0 0.0
  %733 = vmatpush1.msra.mxu0 %v622
  %734 = vmatprep.subr.mxu0 0.0
  %735 = vmatpush1.msra.mxu0 %v623
  %736 = vmatprep.subr.mxu0 0.0
  %737 = vmatpush1.msra.mxu0 %v624
  %738 = vmatprep.subr.mxu0 0.0
  %739 = vmatpush1.msra.mxu0 %v625
  %740 = vmatprep.subr.mxu0 0.0
  %741 = vmatpush1.msra.mxu0 %v626
  %742 = vmatprep.subr.mxu0 0.0
  %743 = vmatpush1.msra.mxu0 %v627
  %744 = vmatprep.subr.mxu0 0.0
  %745 = vmatpush1.msra.mxu0 %v628
  %746 = vmatprep.subr.mxu0 0.0
  %747 = vmatpush1.msra.mxu0 0.0
  %748 = vmatprep.subr.mxu0 0.0
  %749 = vmatpush1.msra.mxu0 0.0
  %750 = vmatprep.subr.mxu0 0.0
  %751 = vmatpush1.msra.mxu0 0.0
  %752 = vmatprep.subr.mxu0 0.0
  %753 = vmatpush1.msra.mxu0 0.0
  %754 = vmatprep.subr.mxu0 0.0
  %755 = vmatpush1.msra.mxu0 0.0
  %756 = vmatprep.subr.mxu0 0.0
  %757 = vmatpush1.msra.mxu0 0.0
  %758 = vmatprep.subr.mxu0 0.0
  %759 = vmatpush1.msra.mxu0 0.0
  %760 = vmatprep.subr.mxu0 0.0
  %761 = vmatpush1.msra.mxu0 0.0
  %762 = vmatprep.subr.mxu0 0.0
  %763 = vmatpush1.msra.mxu0 0.0
  %764 = vmatprep.subr.mxu0 0.0
  %765 = vmatpush1.msra.mxu0 0.0
  %766 = vmatprep.subr.mxu0 0.0
  %767 = vmatpush1.msra.mxu0 0.0
  %768 = vmatprep.subr.mxu0 0.0
  %769 = vmatpush1.msra.mxu0 0.0
  %770 = vmatprep.subr.mxu0 0.0
  %771 = vmatpush1.msra.mxu0 0.0
  %772 = vmatprep.subr.mxu0 0.0
  %773 = vmatpush1.msra.mxu0 0.0
  %774 = vmatprep.subr.mxu0 0.0
  %775 = vmatpush1.msra.mxu0 0.0
  %776 = vmatprep.subr.mxu0 0.0
  %777 = vmatpush1.msra.mxu0 0.0
  %778 = vmatprep.mubr.f32.mxu0 0.0
  %779 = vmatmul.mubr.f32.gmra.mrb[0].mxu0 %v577
  %v780 = vpop.f32.mrb[0].mxu0
  %v781 = vadd.f32 %v696, %v780
  %v782 = vpop.f32.mrb[0].mxu0
  %783 = vmatprep.mubr.f32.mxu0 0.0
  %784 = vmatmul.mubr.f32.gmra.mrb[0].mxu0 %v578
  %v785 = vpop.f32.mrb[0].mxu0
  %v786 = vadd.f32 %v701, %v785
  %v787 = vpop.f32.mrb[0].mxu0
  %788 = vmatprep.mubr.f32.mxu0 0.0
  %789 = vmatmul.mubr.f32.gmra.mrb[0].mxu0 %v579
  %v790 = vpop.f32.mrb[0].mxu0
  %v791 = vadd.f32 %v706, %v790
  %v792 = vpop.f32.mrb[0].mxu0
  %793 = vmatprep.mubr.f32.mxu0 0.0
  %794 = vmatmul.mubr.f32.gmra.mrb[0].mxu0 %v580
  %v795 = vpop.f32.mrb[0].mxu0
  %v796 = vadd.f32 %v711, %v795
  %v797 = vpop.f32.mrb[0].mxu0
  %798 = vdwg.mxu0
  %v799 = vld [vmem:[%s5] sm:$0x1]
  %v800 = vld [vmem:[%s6] sm:$0x1]
  %v801 = vadd.f32 %v781, %v786
  %v802 = vadd.f32 %v801, %v791
  %v803 = vadd.f32 %v802, %v796
  %v804 = vrot.slane %v803, 4
  %v805 = vadd.f32 %v803, %v804
  %v806 = vrot.slane %v805, 2
  %v807 = vadd.f32 %v805, %v806
  %v808 = vrot.slane %v807, 1
  %v809 = vadd.f32 %v807, %v808
  %v810 = vmul.f32 %v781, %v781
  %v811 = vmul.f32 %v786, %v786
  %v812 = vmul.f32 %v791, %v791
  %v813 = vmul.f32 %v796, %v796
  %v814 = vadd.f32 %v810, %v811
  %v815 = vadd.f32 %v814, %v812
  %v816 = vadd.f32 %v815, %v813
  %v817 = vrot.slane %v816, 4
  %v818 = vadd.f32 %v816, %v817
  %v819 = vrot.slane %v818, 2
  %v820 = vadd.f32 %v818, %v819
  %v821 = vrot.slane %v820, 1
  %v822 = vadd.f32 %v820, %v821
  %v823 = vsel %vm356, %v809, %v822
  %824 = vmatprep.subr.mxu0 0.0
  %825 = vmatpush1.msra.mxu0 %v38
  %826 = vmatprep.subr.mxu0 0.0
  %827 = vmatpush1.msra.mxu0 %v39
  %828 = vmatprep.subr.mxu0 0.0
  %829 = vmatpush1.msra.mxu0 %v40
  %830 = vmatprep.subr.mxu0 0.0
  %831 = vmatpush1.msra.mxu0 %v41
  %832 = vmatprep.subr.mxu0 0.0
  %833 = vmatpush1.msra.mxu0 %v42
  %834 = vmatprep.subr.mxu0 0.0
  %835 = vmatpush1.msra.mxu0 %v43
  %836 = vmatprep.subr.mxu0 0.0
  %837 = vmatpush1.msra.mxu0 %v44
  %838 = vmatprep.subr.mxu0 0.0
  %839 = vmatpush1.msra.mxu0 %v45
  %840 = vmatprep.subr.mxu0 0.0
  %841 = vmatpush1.msra.mxu0 %v46
  %842 = vmatprep.subr.mxu0 0.0
  %843 = vmatpush1.msra.mxu0 %v47
  %844 = vmatprep.subr.mxu0 0.0
  %845 = vmatpush1.msra.mxu0 %v48
  %846 = vmatprep.subr.mxu0 0.0
  %847 = vmatpush1.msra.mxu0 %v49
  %848 = vmatprep.subr.mxu0 0.0
  %849 = vmatpush1.msra.mxu0 %v50
  %850 = vmatprep.subr.mxu0 0.0
  %851 = vmatpush1.msra.mxu0 %v51
  %852 = vmatprep.subr.mxu0 0.0
  %853 = vmatpush1.msra.mxu0 %v52
  %854 = vmatprep.subr.mxu0 0.0
  %855 = vmatpush1.msra.mxu0 %v53
  %856 = vmatprep.subr.mxu0 0.0
  %857 = vmatpush1.msra.mxu0 0.0
  %858 = vmatprep.subr.mxu0 0.0
  %859 = vmatpush1.msra.mxu0 0.0
  %860 = vmatprep.subr.mxu0 0.0
  %861 = vmatpush1.msra.mxu0 0.0
  %862 = vmatprep.subr.mxu0 0.0
  %863 = vmatpush1.msra.mxu0 0.0
  %864 = vmatprep.subr.mxu0 0.0
  %865 = vmatpush1.msra.mxu0 0.0
  %866 = vmatprep.subr.mxu0 0.0
  %867 = vmatpush1.msra.mxu0 0.0
  %868 = vmatprep.subr.mxu0 0.0
  %869 = vmatpush1.msra.mxu0 0.0
  %870 = vmatprep.subr.mxu0 0.0
  %871 = vmatpush1.msra.mxu0 0.0
  %872 = vmatprep.subr.mxu0 0.0
  %873 = vmatpush1.msra.mxu0 0.0
  %874 = vmatprep.subr.mxu0 0.0
  %875 = vmatpush1.msra.mxu0 0.0
  %876 = vmatprep.subr.mxu0 0.0
  %877 = vmatpush1.msra.mxu0 0.0
  %878 = vmatprep.subr.mxu0 0.0
  %879 = vmatpush1.msra.mxu0 0.0
  %880 = vmatprep.subr.mxu0 0.0
  %881 = vmatpush1.msra.mxu0 0.0
  %882 = vmatprep.subr.mxu0 0.0
  %883 = vmatpush1.msra.mxu0 0.0
  %884 = vmatprep.subr.mxu0 0.0
  %885 = vmatpush1.msra.mxu0 0.0
  %886 = vmatprep.subr.mxu0 0.0
  %887 = vmatpush1.msra.mxu0 0.0
  %888 = vmatprep.mubr.f32.mxu0 0.0
  %889 = vmatmul.mubr.f32.gmra.mrb[0].mxu0 %v823
  %v890 = vpop.f32.mrb[0].mxu0
  %v891 = vadd.f32 0.0, %v890
  %v892 = vpop.f32.mrb[0].mxu0
  %893 = vdwg.mxu0
  %v894 = vmul.f32 %v891, 0.001953125
  %v895 = vmul.f32 %v894, %v894
  %v897 = vrot.slane %v895, 7
  %v899 = vsub.f32 %v894, %v897
  %v900 = vadd.f32 %v899, 1e-05
  %v901 = vrsqrt.pop %v900
  %v904 = vunpack.c.l.s4 1966171168
  %v905 = vunpack.c.0.s8 %v904
  %v906 = vlaneseq
  %v907 = vshrl.u32 %v906, 7
  %v908 = vsub.s32 %v905, %v907
  %v909 = vrot.slane %v901, %v908
  %v910 = vcombine.high %v909, %v909
  %v912 = vunpack.c.l.s4 1966171168
  %v913 = vunpack.c.0.s8 %v912
  %v914 = vlaneseq
  %v915 = vshrl.u32 %v914, 7
  %v916 = vsub.s32 %v913, %v915
  %v917 = vrot.slane %v910, %v916
  %v919 = vmul.f32 %v799, %v917
  %v920 = vmul.f32 %v894, %v919
  %v921 = vsub.f32 %v800, %v920
  %v923 = vlaneseq
  %v924 = vshrl.u32 %v923, 7
  %v925 = vsub.s32 0, %v924
  %v926 = vrot.slane %v921, %v925
  %v928 = vsel %vm356, %v919, %v926
  %v930 = vsel %vm463, %v928, 0
  %932 = vmatprep.subr.mxu0 0.0
  %933 = vmatpush1.msra.mxu0 %v54
  %934 = vmatprep.subr.mxu0 0.0
  %935 = vmatpush1.msra.mxu0 0.0
  %936 = vmatprep.subr.mxu0 0.0
  %937 = vmatpush1.msra.mxu0 0.0
  %938 = vmatprep.subr.mxu0 0.0
  %939 = vmatpush1.msra.mxu0 0.0
  %940 = vmatprep.subr.mxu0 0.0
  %941 = vmatpush1.msra.mxu0 0.0
  %942 = vmatprep.subr.mxu0 0.0
  %943 = vmatpush1.msra.mxu0 0.0
  %944 = vmatprep.subr.mxu0 0.0
  %945 = vmatpush1.msra.mxu0 0.0
  %946 = vmatprep.subr.mxu0 0.0
  %947 = vmatpush1.msra.mxu0 0.0
  %948 = vmatprep.subr.mxu0 0.0
  %949 = vmatpush1.msra.mxu0 0.0
  %950 = vmatprep.subr.mxu0 0.0
  %951 = vmatpush1.msra.mxu0 0.0
  %952 = vmatprep.subr.mxu0 0.0
  %953 = vmatpush1.msra.mxu0 0.0
  %954 = vmatprep.subr.mxu0 0.0
  %955 = vmatpush1.msra.mxu0 0.0
  %956 = vmatprep.subr.mxu0 0.0
  %957 = vmatpush1.msra.mxu0 0.0
  %958 = vmatprep.subr.mxu0 0.0
  %959 = vmatpush1.msra.mxu0 0.0
  %960 = vmatprep.subr.mxu0 0.0
  %961 = vmatpush1.msra.mxu0 0.0
  %962 = vmatprep.subr.mxu0 0.0
  %963 = vmatpush1.msra.mxu0 0.0
  %964 = vmatprep.subr.mxu0 0.0
  %965 = vmatpush1.msra.mxu0 0.0
  %966 = vmatprep.subr.mxu0 0.0
  %967 = vmatpush1.msra.mxu0 0.0
  %968 = vmatprep.subr.mxu0 0.0
  %969 = vmatpush1.msra.mxu0 0.0
  %970 = vmatprep.subr.mxu0 0.0
  %971 = vmatpush1.msra.mxu0 0.0
  %972 = vmatprep.subr.mxu0 0.0
  %973 = vmatpush1.msra.mxu0 0.0
  %974 = vmatprep.subr.mxu0 0.0
  %975 = vmatpush1.msra.mxu0 0.0
  %976 = vmatprep.subr.mxu0 0.0
  %977 = vmatpush1.msra.mxu0 0.0
  %978 = vmatprep.subr.mxu0 0.0
  %979 = vmatpush1.msra.mxu0 0.0
  %980 = vmatprep.subr.mxu0 0.0
  %981 = vmatpush1.msra.mxu0 0.0
  %982 = vmatprep.subr.mxu0 0.0
  %983 = vmatpush1.msra.mxu0 0.0
  %984 = vmatprep.subr.mxu0 0.0
  %985 = vmatpush1.msra.mxu0 0.0
  %986 = vmatprep.subr.mxu0 0.0
  %987 = vmatpush1.msra.mxu0 0.0
  %988 = vmatprep.subr.mxu0 0.0
  %989 = vmatpush1.msra.mxu0 0.0
  %990 = vmatprep.subr.mxu0 0.0
  %991 = vmatpush1.msra.mxu0 0.0
  %992 = vmatprep.subr.mxu0 0.0
  %993 = vmatpush1.msra.mxu0 0.0
  %994 = vmatprep.subr.mxu0 0.0
  %995 = vmatpush1.msra.mxu0 0.0
  %996 = vmatprep.mubr.f32.mxu0 0.0
  %997 = vmatmul.mubr.f32.gmra.mrb[0].mxu0 %v930
  %v998 = vpop.f32.mrb[0].mxu0
  %v999 = vadd.f32 0.0, %v998
  %v1000 = vpop.f32.mrb[0].mxu0
  %1001 = vdwg.mxu0
  %v1002 = vlaneseq
  %v1003 = vshrl.u32 %v1002, 7
  %v1004 = vsub.s32 0, %v1003
  %v1005 = vrot.slane %v999, %v1004
  %v1006 = vmul.f32 %v781, %v1005
  %v1007 = vmul.f32 %v786, %v1005
  %v1008 = vmul.f32 %v791, %v1005
  %v1009 = vmul.f32 %v796, %v1005
  %v1010 = vlaneseq
  %v1011 = vshrl.u32 %v1010, 7
  %v1012 = vsub.s32 1, %v1011
  %v1013 = vrot.slane %v999, %v1012
  %v1014 = vadd.f32 %v1006, %v1013
  %v1015 = vadd.f32 %v1007, %v1013
  %v1016 = vadd.f32 %v1008, %v1013
  %v1017 = vadd.f32 %v1009, %v1013
  %v1018 = vld [vmem:[%s7] sm:$0x1]
  %v1019 = vld [vmem:[%s8] sm:$0x1]
  %v1020 = vadd.f32 %v312, %v318
  %v1021 = vadd.f32 %v1020, %v324
  %v1022 = vadd.f32 %v1021, %v330
  %v1023 = vrot.slane %v1022, 4
  %v1024 = vadd.f32 %v1022, %v1023
  %v1025 = vrot.slane %v1024, 2
  %v1026 = vadd.f32 %v1024, %v1025
  %v1027 = vrot.slane %v1026, 1
  %v1028 = vadd.f32 %v1026, %v1027
  %v1029 = vmul.f32 %v312, %v312
  %v1030 = vmul.f32 %v318, %v318
  %v1031 = vmul.f32 %v324, %v324
  %v1032 = vmul.f32 %v330, %v330
  %v1033 = vadd.f32 %v1029, %v1030
  %v1034 = vadd.f32 %v1033, %v1031
  %v1035 = vadd.f32 %v1034, %v1032
  %v1036 = vrot.slane %v1035, 4
  %v1037 = vadd.f32 %v1035, %v1036
  %v1038 = vrot.slane %v1037, 2
  %v1039 = vadd.f32 %v1037, %v1038
  %v1040 = vrot.slane %v1039, 1
  %v1041 = vadd.f32 %v1039, %v1040
  %v1042 = vsel %vm356, %v1028, %v1041
  %1043 = vmatprep.subr.mxu0 0.0
  %1044 = vmatpush1.msra.mxu0 %v38
  %1045 = vmatprep.subr.mxu0 0.0
  %1046 = vmatpush1.msra.mxu0 %v39
  %1047 = vmatprep.subr.mxu0 0.0
  %1048 = vmatpush1.msra.mxu0 %v40
  %1049 = vmatprep.subr.mxu0 0.0
  %1050 = vmatpush1.msra.mxu0 %v41
  %1051 = vmatprep.subr.mxu0 0.0
  %1052 = vmatpush1.msra.mxu0 %v42
  %1053 = vmatprep.subr.mxu0 0.0
  %1054 = vmatpush1.msra.mxu0 %v43
  %1055 = vmatprep.subr.mxu0 0.0
  %1056 = vmatpush1.msra.mxu0 %v44
  %1057 = vmatprep.subr.mxu0 0.0
  %1058 = vmatpush1.msra.mxu0 %v45
  %1059 = vmatprep.subr.mxu0 0.0
  %1060 = vmatpush1.msra.mxu0 %v46
  %1061 = vmatprep.subr.mxu0 0.0
  %1062 = vmatpush1.msra.mxu0 %v47
  %1063 = vmatprep.subr.mxu0 0.0
  %1064 = vmatpush1.msra.mxu0 %v48
  %1065 = vmatprep.subr.mxu0 0.0
  %1066 = vmatpush1.msra.mxu0 %v49
  %1067 = vmatprep.subr.mxu0 0.0
  %1068 = vmatpush1.msra.mxu0 %v50
  %1069 = vmatprep.subr.mxu0 0.0
  %1070 = vmatpush1.msra.mxu0 %v51
  %1071 = vmatprep.subr.mxu0 0.0
  %1072 = vmatpush1.msra.mxu0 %v52
  %1073 = vmatprep.subr.mxu0 0.0
  %1074 = vmatpush1.msra.mxu0 %v53
  %1075 = vmatprep.subr.mxu0 0.0
  %1076 = vmatpush1.msra.mxu0 0.0
  %1077 = vmatprep.subr.mxu0 0.0
  %1078 = vmatpush1.msra.mxu0 0.0
  %1079 = vmatprep.subr.mxu0 0.0
  %1080 = vmatpush1.msra.mxu0 0.0
  %1081 = vmatprep.subr.mxu0 0.0
  %1082 = vmatpush1.msra.mxu0 0.0
  %1083 = vmatprep.subr.mxu0 0.0
  %1084 = vmatpush1.msra.mxu0 0.0
  %1085 = vmatprep.subr.mxu0 0.0
  %1086 = vmatpush1.msra.mxu0 0.0
  %1087 = vmatprep.subr.mxu0 0.0
  %1088 = vmatpush1.msra.mxu0 0.0
  %1089 = vmatprep.subr.mxu0 0.0
  %1090 = vmatpush1.msra.mxu0 0.0
  %1091 = vmatprep.subr.mxu0 0.0
  %1092 = vmatpush1.msra.mxu0 0.0
  %1093 = vmatprep.subr.mxu0 0.0
  %1094 = vmatpush1.msra.mxu0 0.0
  %1095 = vmatprep.subr.mxu0 0.0
  %1096 = vmatpush1.msra.mxu0 0.0
  %1097 = vmatprep.subr.mxu0 0.0
  %1098 = vmatpush1.msra.mxu0 0.0
  %1099 = vmatprep.subr.mxu0 0.0
  %1100 = vmatpush1.msra.mxu0 0.0
  %1101 = vmatprep.subr.mxu0 0.0
  %1102 = vmatpush1.msra.mxu0 0.0
  %1103 = vmatprep.subr.mxu0 0.0
  %1104 = vmatpush1.msra.mxu0 0.0
  %1105 = vmatprep.subr.mxu0 0.0
  %1106 = vmatpush1.msra.mxu0 0.0
  %1107 = vmatprep.mubr.f32.mxu0 0.0
  %1108 = vmatmul.mubr.f32.gmra.mrb[0].mxu0 %v1042
  %v1109 = vpop.f32.mrb[0].mxu0
  %v1110 = vadd.f32 0.0, %v1109
  %v1111 = vpop.f32.mrb[0].mxu0
  %1112 = vdwg.mxu0
  %v1113 = vmul.f32 %v1110, 0.001953125
  %v1114 = vmul.f32 %v1113, %v1113
  %v1116 = vrot.slane %v1114, 7
  %v1118 = vsub.f32 %v1113, %v1116
  %v1119 = vadd.f32 %v1118, 1e-05
  %v1120 = vrsqrt.pop %v1119
  %v1123 = vunpack.c.l.s4 1966171168
  %v1124 = vunpack.c.0.s8 %v1123
  %v1125 = vlaneseq
  %v1126 = vshrl.u32 %v1125, 7
  %v1127 = vsub.s32 %v1124, %v1126
  %v1128 = vrot.slane %v1120, %v1127
  %v1129 = vcombine.high %v1128, %v1128
  %v1131 = vunpack.c.l.s4 1966171168
  %v1132 = vunpack.c.0.s8 %v1131
  %v1133 = vlaneseq
  %v1134 = vshrl.u32 %v1133, 7
  %v1135 = vsub.s32 %v1132, %v1134
  %v1136 = vrot.slane %v1129, %v1135
  %v1138 = vmul.f32 %v1018, %v1136
  %v1139 = vmul.f32 %v1113, %v1138
  %v1140 = vsub.f32 %v1019, %v1139
  %v1142 = vlaneseq
  %v1143 = vshrl.u32 %v1142, 7
  %v1144 = vsub.s32 0, %v1143
  %v1145 = vrot.slane %v1140, %v1144
  %v1147 = vsel %vm356, %v1138, %v1145
  %v1149 = vsel %vm463, %v1147, 0
  %1151 = vmatprep.subr.mxu0 0.0
  %1152 = vmatpush1.msra.mxu0 %v54
  %1153 = vmatprep.subr.mxu0 0.0
  %1154 = vmatpush1.msra.mxu0 0.0
  %1155 = vmatprep.subr.mxu0 0.0
  %1156 = vmatpush1.msra.mxu0 0.0
  %1157 = vmatprep.subr.mxu0 0.0
  %1158 = vmatpush1.msra.mxu0 0.0
  %1159 = vmatprep.subr.mxu0 0.0
  %1160 = vmatpush1.msra.mxu0 0.0
  %1161 = vmatprep.subr.mxu0 0.0
  %1162 = vmatpush1.msra.mxu0 0.0
  %1163 = vmatprep.subr.mxu0 0.0
  %1164 = vmatpush1.msra.mxu0 0.0
  %1165 = vmatprep.subr.mxu0 0.0
  %1166 = vmatpush1.msra.mxu0 0.0
  %1167 = vmatprep.subr.mxu0 0.0
  %1168 = vmatpush1.msra.mxu0 0.0
  %1169 = vmatprep.subr.mxu0 0.0
  %1170 = vmatpush1.msra.mxu0 0.0
  %1171 = vmatprep.subr.mxu0 0.0
  %1172 = vmatpush1.msra.mxu0 0.0
  %1173 = vmatprep.subr.mxu0 0.0
  %1174 = vmatpush1.msra.mxu0 0.0
  %1175 = vmatprep.subr.mxu0 0.0
  %1176 = vmatpush1.msra.mxu0 0.0
  %1177 = vmatprep.subr.mxu0 0.0
  %1178 = vmatpush1.msra.mxu0 0.0
  %1179 = vmatprep.subr.mxu0 0.0
  %1180 = vmatpush1.msra.mxu0 0.0
  %1181 = vmatprep.subr.mxu0 0.0
  %1182 = vmatpush1.msra.mxu0 0.0
  %1183 = vmatprep.subr.mxu0 0.0
  %1184 = vmatpush1.msra.mxu0 0.0
  %1185 = vmatprep.subr.mxu0 0.0
  %1186 = vmatpush1.msra.mxu0 0.0
  %1187 = vmatprep.subr.mxu0 0.0
  %1188 = vmatpush1.msra.mxu0 0.0
  %1189 = vmatprep.subr.mxu0 0.0
  %1190 = vmatpush1.msra.mxu0 0.0
  %1191 = vmatprep.subr.mxu0 0.0
  %1192 = vmatpush1.msra.mxu0 0.0
  %1193 = vmatprep.subr.mxu0 0.0
  %1194 = vmatpush1.msra.mxu0 0.0
  %1195 = vmatprep.subr.mxu0 0.0
  %1196 = vmatpush1.msra.mxu0 0.0
  %1197 = vmatprep.subr.mxu0 0.0
  %1198 = vmatpush1.msra.mxu0 0.0
  %1199 = vmatprep.subr.mxu0 0.0
  %1200 = vmatpush1.msra.mxu0 0.0
  %1201 = vmatprep.subr.mxu0 0.0
  %1202 = vmatpush1.msra.mxu0 0.0
  %1203 = vmatprep.subr.mxu0 0.0
  %1204 = vmatpush1.msra.mxu0 0.0
  %1205 = vmatprep.subr.mxu0 0.0
  %1206 = vmatpush1.msra.mxu0 0.0
  %1207 = vmatprep.subr.mxu0 0.0
  %1208 = vmatpush1.msra.mxu0 0.0
  %1209 = vmatprep.subr.mxu0 0.0
  %1210 = vmatpush1.msra.mxu0 0.0
  %1211 = vmatprep.subr.mxu0 0.0
  %1212 = vmatpush1.msra.mxu0 0.0
  %1213 = vmatprep.subr.mxu0 0.0
  %1214 = vmatpush1.msra.mxu0 0.0
  %1215 = vmatprep.mubr.f32.mxu0 0.0
  %1216 = vmatmul.mubr.f32.gmra.mrb[0].mxu0 %v1149
  %v1217 = vpop.f32.mrb[0].mxu0
  %v1218 = vadd.f32 0.0, %v1217
  %v1219 = vpop.f32.mrb[0].mxu0
  %1220 = vdwg.mxu0
  %v1221 = vlaneseq
  %v1222 = vshrl.u32 %v1221, 7
  %v1223 = vsub.s32 0, %v1222
  %v1224 = vrot.slane %v1218, %v1223
  %v1225 = vmul.f32 %v312, %v1224
  %v1226 = vmul.f32 %v318, %v1224
  %v1227 = vmul.f32 %v324, %v1224
  %v1228 = vmul.f32 %v330, %v1224
  %v1229 = vlaneseq
  %v1230 = vshrl.u32 %v1229, 7
  %v1231 = vsub.s32 1, %v1230
  %v1232 = vrot.slane %v1218, %v1231
  %v1233 = vadd.f32 %v1225, %v1232
  %v1234 = vadd.f32 %v1226, %v1232
  %v1235 = vadd.f32 %v1227, %v1232
  %v1236 = vadd.f32 %v1228, %v1232
  %v1237 = vadd.f32 %v1014, %v1233
  %v1238 = vadd.f32 %v1015, %v1234
  %v1239 = vadd.f32 %v1016, %v1235
  %v1240 = vadd.f32 %v1017, %v1236
  %v1241 = vmax.f32 %v1237, 0.0
  %v1242 = vmax.f32 %v1238, 0.0
  %v1243 = vmax.f32 %v1239, 0.0
  %v1244 = vmax.f32 %v1240, 0.0
  %1245 = vst [vmem:[%s11] sm:$0xff] %v1241
  %1246 = vst [vmem:[%s11 + $0x8] sm:$0xff] %v1242
  %1247 = vst [vmem:[%s11 + $0x10] sm:$0xff] %v1243
  %1248 = vst [vmem:[%s11 + $0x18] sm:$0xff] %v1244
  // Predicated region
  $region46: #{resblock_forward.1} parent=0 // pred_check
    _
  $region47: #{resblock_forward.1} parent=0 // pred_check_branch
    %1250 = sbr.rel (0) target = $region49
  $region48: #{resblock_forward.1} parent=0 // pred_region
    _
  $region49: #{resblock_forward.1} parent=0 // pred_fallthru
    _
  // Predicated region
  $region50: #{resblock_forward.1} parent=0 // pred_check
    _
  $region51: #{resblock_forward.1} parent=0 // pred_check_branch
    %1252 = sbr.rel (0) target = $region53
  $region52: #{resblock_forward.1} parent=0 // pred_region
    _
  $region53: #{resblock_forward.1} parent=0 // pred_fallthru
    _

</llo_original>
